<compile_context>
chip_gen: v6e
topology: v6e:2x2x1
jax: 0.10.0
libtpu: 0.0.40
codegen_flags: <defaults>
</compile_context>

<pallas_src>
import functools
import math

import jax
import jax.numpy as jnp
from jax.experimental import pallas as pl
from jax.experimental.pallas import tpu as pltpu


# --------------------------------------------------------------------------- #
# Fused multi-head-attention kernel: one grid step handles one batch element.
# --------------------------------------------------------------------------- #
def _mha_kernel(q_ref, k_ref, v_ref,
                wq_ref, wk_ref, wv_ref, wo_ref,
                bq_ref, bk_ref, bv_ref, bo_ref,
                o_ref, *, num_heads, dim_q, dim_k, inv_scale):
    # activations for this batch element, cast to bf16 for the MXU
    xq = q_ref[0].astype(jnp.bfloat16)          # (S, Din)
    xk = k_ref[0].astype(jnp.bfloat16)          # (S, Din)
    xv = v_ref[0].astype(jnp.bfloat16)          # (S, Din)

    # fused all-head projections: (S, Din) @ (Din, H*dh) -> (S, H*dh), f32 accum
    q_all = jnp.dot(xq, wq_ref[...], preferred_element_type=jnp.float32) + bq_ref[...]
    k_all = jnp.dot(xk, wk_ref[...], preferred_element_type=jnp.float32) + bk_ref[...]
    v_all = jnp.dot(xv, wv_ref[...], preferred_element_type=jnp.float32) + bv_ref[...]

    # fold the 1/sqrt(dim_q) softmax scale into q once
    q_all = q_all * jnp.float32(inv_scale)

    head_outs = []
    for h in range(num_heads):
        qh = q_all[:, h * dim_q:(h + 1) * dim_q].astype(jnp.bfloat16)  # (S, dq)
        kh = k_all[:, h * dim_k:(h + 1) * dim_k].astype(jnp.bfloat16)  # (S, dk)
        vh = v_all[:, h * dim_k:(h + 1) * dim_k].astype(jnp.bfloat16)  # (S, dk)

        # scores: contract the head dim directly (no materialized k transpose)
        s = jax.lax.dot_general(qh, kh, (((1,), (1,)), ((), ())),
                                preferred_element_type=jnp.float32)    # (S, S)
        s = s - jnp.max(s, axis=-1, keepdims=True)
        p = jnp.exp(s)
        denom = jnp.sum(p, axis=-1, keepdims=True)
        p = p * pl.reciprocal(denom, approx=True)                      # EUP slot

        head_outs.append(
            jnp.dot(p.astype(jnp.bfloat16), vh,
                    preferred_element_type=jnp.float32))               # (S, dk)

    heads = jnp.concatenate(head_outs, axis=-1)                        # (S, H*dk)

    # output projection (lane-dense: last dim = Din)
    out = jnp.dot(heads.astype(jnp.bfloat16), wo_ref[...],
                  preferred_element_type=jnp.float32) + bo_ref[...]    # (S, Din)
    o_ref[...] = out[None].astype(o_ref.dtype)


def multi_head_attention(query, key, value, params):
    """query/key/value: (B, S, dim_in) float32.  Returns (B, S, dim_in)."""
    B, S, Din = query.shape
    num_heads = params["num_heads"]
    dim_q = params["dim_q"]
    dim_k = params["dim_k"]
    assert dim_q == dim_k, "scaled_dot_product_attention requires dim_q == dim_k"

    # weights pre-cast to bf16 (f32 accumulation happens in the kernel);
    # biases stay f32 and are added after accumulation.
    wq = params["wq"].astype(jnp.bfloat16)      # (Din, H*dq)
    wk = params["wk"].astype(jnp.bfloat16)      # (Din, H*dk)
    wv = params["wv"].astype(jnp.bfloat16)      # (Din, H*dk)
    wo = params["wo"].astype(jnp.bfloat16)      # (H*dk, Din)
    bq, bk, bv, bo = params["bq"], params["bk"], params["bv"], params["bo"]

    kernel = functools.partial(
        _mha_kernel,
        num_heads=num_heads, dim_q=dim_q, dim_k=dim_k,
        inv_scale=1.0 / math.sqrt(dim_q))

    return pl.pallas_call(
        kernel,
        out_shape=jax.ShapeDtypeStruct((B, S, Din), jnp.float32),
        grid=(B,),
        in_specs=[
            pl.BlockSpec((1, S, Din), lambda b: (b, 0, 0)),      # query
            pl.BlockSpec((1, S, Din), lambda b: (b, 0, 0)),      # key
            pl.BlockSpec((1, S, Din), lambda b: (b, 0, 0)),      # value
            pl.BlockSpec(wq.shape, lambda b: (0, 0)),            # wq (resident)
            pl.BlockSpec(wk.shape, lambda b: (0, 0)),            # wk
            pl.BlockSpec(wv.shape, lambda b: (0, 0)),            # wv
            pl.BlockSpec(wo.shape, lambda b: (0, 0)),            # wo
            pl.BlockSpec(bq.shape, lambda b: (0, 0)),            # bq
            pl.BlockSpec(bk.shape, lambda b: (0, 0)),            # bk
            pl.BlockSpec(bv.shape, lambda b: (0, 0)),            # bv
            pl.BlockSpec(bo.shape, lambda b: (0, 0)),            # bo
        ],
        out_specs=pl.BlockSpec((1, S, Din), lambda b: (b, 0, 0)),
        compiler_params=pltpu.CompilerParams(
            dimension_semantics=("parallel",)),                  # B>=2 -> both v7x TCs
    )(query, key, value, wq, wk, wv, wo, bq, bk, bv, bo)


# --------------------------------------------------------------------------- #
# Deterministic synthetic parameters (per-head Linear weights stacked fused)
# --------------------------------------------------------------------------- #
def init_params(key, num_heads, dim_in, dim_q, dim_k):
    keys = jax.random.split(key, 8)

    def rnd(k, shape):
        return (jax.random.normal(k, shape, jnp.float32) * 0.05)

    return dict(
        num_heads=num_heads, dim_q=dim_q, dim_k=dim_k,
        # per-head Linear(dim_in, dim_q/dim_k) weights stacked along columns
        wq=rnd(keys[0], (dim_in, num_heads * dim_q)),
        bq=rnd(keys[1], (1, num_heads * dim_q)),
        wk=rnd(keys[2], (dim_in, num_heads * dim_k)),
        bk=rnd(keys[3], (1, num_heads * dim_k)),
        wv=rnd(keys[4], (dim_in, num_heads * dim_k)),
        bv=rnd(keys[5], (1, num_heads * dim_k)),
        # self.linear: Linear(num_heads * dim_k, dim_in)
        wo=rnd(keys[6], (num_heads * dim_k, dim_in)),
        bo=rnd(keys[7], (1, dim_in)),
    )


# --------------------------------------------------------------------------- #
# Pure-JAX reference (float32) mirroring the PyTorch module, for validation.
# --------------------------------------------------------------------------- #
def mha_reference(query, key, value, params):
    H, dq, dk = params["num_heads"], params["dim_q"], params["dim_k"]
    q = query @ params["wq"] + params["bq"]
    k = key @ params["wk"] + params["bk"]
    v = value @ params["wv"] + params["bv"]
    outs = []
    for h in range(H):
        qh = q[..., h * dq:(h + 1) * dq]
        kh = k[..., h * dk:(h + 1) * dk]
        vh = v[..., h * dk:(h + 1) * dk]
        s = jnp.einsum("bsd,btd->bst", qh, kh) / math.sqrt(dq)
        p = jax.nn.softmax(s, axis=-1)
        outs.append(jnp.einsum("bst,btd->bsd", p, vh))
    heads = jnp.concatenate(outs, axis=-1)
    return heads @ params["wo"] + params["bo"]


# --------------------------------------------------------------------------- #
if __name__ == "__main__":
    key = jax.random.PRNGKey(0)
    pkey, qkey, kkey, vkey = jax.random.split(key, 4)

    # small shapes consistent with the module
    B, S = 2, 32
    num_heads, dim_in = 4, 128
    dim_q = dim_k = dim_in // num_heads          # 32

    params = init_params(pkey, num_heads, dim_in, dim_q, dim_k)
    query = jax.random.normal(qkey, (B, S, dim_in), jnp.float32)
    key_t = jax.random.normal(kkey, (B, S, dim_in), jnp.float32)
    value = jax.random.normal(vkey, (B, S, dim_in), jnp.float32)

    mha = jax.jit(lambda q, k, v: multi_head_attention(q, k, v, params))
    out = jax.block_until_ready(mha(query, key_t, value))

    assert out.shape == (B, S, dim_in), out.shape
    assert bool(jnp.all(jnp.isfinite(out)))

    # loose tolerance: kernel uses bf16 MXU operands + approx reciprocal
    ref = mha_reference(query, key_t, value, params)
    assert bool(jnp.allclose(out, ref, atol=3e-2, rtol=3e-2)), \
        float(jnp.max(jnp.abs(out - ref)))

    print("KERNEL_OK")
</pallas_src>

<mosaic_0001>
module attributes {stable_mosaic.version = 11 : i64} {
  func.func @_mha_kernel(%arg0: i32, %arg1: memref<1x32x128xf32, #tpu.memory_space<vmem>>, %arg2: memref<1x32x128xf32, #tpu.memory_space<vmem>>, %arg3: memref<1x32x128xf32, #tpu.memory_space<vmem>>, %arg4: memref<128x128xbf16, #tpu.memory_space<vmem>>, %arg5: memref<128x128xbf16, #tpu.memory_space<vmem>>, %arg6: memref<128x128xbf16, #tpu.memory_space<vmem>>, %arg7: memref<128x128xbf16, #tpu.memory_space<vmem>>, %arg8: memref<1x128xf32, #tpu.memory_space<vmem>>, %arg9: memref<1x128xf32, #tpu.memory_space<vmem>>, %arg10: memref<1x128xf32, #tpu.memory_space<vmem>>, %arg11: memref<1x128xf32, #tpu.memory_space<vmem>>, %arg12: memref<1x32x128xf32, #tpu.memory_space<vmem>>) attributes {dimension_semantics = [#tpu.dimension_semantics<parallel>], iteration_bounds = array<i64: 2>, scalar_prefetch = 0 : i64, scratch_operands = 0 : i64, tpu.core_type = #tpu.core_type<tc>, window_params = [{transform_indices = @transform_0, window_bounds = array<i64: 1, 32, 128>}, {transform_indices = @transform_1, window_bounds = array<i64: 1, 32, 128>}, {transform_indices = @transform_2, window_bounds = array<i64: 1, 32, 128>}, {pipeline_mode = #tpu.pipeline_mode<synchronous>, transform_indices = @transform_3, window_bounds = array<i64: 128, 128>}, {pipeline_mode = #tpu.pipeline_mode<synchronous>, transform_indices = @transform_4, window_bounds = array<i64: 128, 128>}, {pipeline_mode = #tpu.pipeline_mode<synchronous>, transform_indices = @transform_5, window_bounds = array<i64: 128, 128>}, {pipeline_mode = #tpu.pipeline_mode<synchronous>, transform_indices = @transform_6, window_bounds = array<i64: 128, 128>}, {pipeline_mode = #tpu.pipeline_mode<synchronous>, transform_indices = @transform_7, window_bounds = array<i64: 1, 128>}, {pipeline_mode = #tpu.pipeline_mode<synchronous>, transform_indices = @transform_8, window_bounds = array<i64: 1, 128>}, {pipeline_mode = #tpu.pipeline_mode<synchronous>, transform_indices = @transform_9, window_bounds = array<i64: 1, 128>}, {pipeline_mode = #tpu.pipeline_mode<synchronous>, transform_indices = @transform_10, window_bounds = array<i64: 1, 128>}, {transform_indices = @transform_11, window_bounds = array<i64: 1, 32, 128>}]} {
    %c0 = arith.constant 0 : index
    %c0_0 = arith.constant 0 : index
    %c0_1 = arith.constant 0 : index
    %0 = vector.load %arg1[%c0, %c0_0, %c0_1] : memref<1x32x128xf32, #tpu.memory_space<vmem>>, vector<1x32x128xf32>
    %1 = vector.shape_cast %0 : vector<1x32x128xf32> to vector<32x128xf32>
    %2 = arith.truncf %1 : vector<32x128xf32> to vector<32x128xbf16>
    %c0_2 = arith.constant 0 : index
    %c0_3 = arith.constant 0 : index
    %c0_4 = arith.constant 0 : index
    %3 = vector.load %arg2[%c0_2, %c0_3, %c0_4] : memref<1x32x128xf32, #tpu.memory_space<vmem>>, vector<1x32x128xf32>
    %4 = vector.shape_cast %3 : vector<1x32x128xf32> to vector<32x128xf32>
    %5 = arith.truncf %4 : vector<32x128xf32> to vector<32x128xbf16>
    %c0_5 = arith.constant 0 : index
    %c0_6 = arith.constant 0 : index
    %c0_7 = arith.constant 0 : index
    %6 = vector.load %arg3[%c0_5, %c0_6, %c0_7] : memref<1x32x128xf32, #tpu.memory_space<vmem>>, vector<1x32x128xf32>
    %7 = vector.shape_cast %6 : vector<1x32x128xf32> to vector<32x128xf32>
    %8 = arith.truncf %7 : vector<32x128xf32> to vector<32x128xbf16>
    %c0_8 = arith.constant 0 : index
    %c0_9 = arith.constant 0 : index
    %9 = vector.load %arg4[%c0_8, %c0_9] : memref<128x128xbf16, #tpu.memory_space<vmem>>, vector<128x128xbf16>
    %cst = arith.constant dense<0.000000e+00> : vector<32x128xf32>
    %10 = tpu.matmul %2, %9, %cst {dimension_numbers = #tpu.dot_dimension_numbers<[1], [0], [0], [1], [0, 0, 1, 1], [], []>} : vector<32x128xbf16>, vector<128x128xbf16>, vector<32x128xf32> -> vector<32x128xf32>
    %c0_10 = arith.constant 0 : index
    %c0_11 = arith.constant 0 : index
    %11 = vector.load %arg8[%c0_10, %c0_11] : memref<1x128xf32, #tpu.memory_space<vmem>>, vector<1x128xf32>
    %12 = vector.broadcast %11 : vector<1x128xf32> to vector<32x128xf32>
    %13 = arith.addf %10, %12 : vector<32x128xf32>
    %c0_12 = arith.constant 0 : index
    %c0_13 = arith.constant 0 : index
    %14 = vector.load %arg5[%c0_12, %c0_13] : memref<128x128xbf16, #tpu.memory_space<vmem>>, vector<128x128xbf16>
    %cst_14 = arith.constant dense<0.000000e+00> : vector<32x128xf32>
    %15 = tpu.matmul %5, %14, %cst_14 {dimension_numbers = #tpu.dot_dimension_numbers<[1], [0], [0], [1], [0, 0, 1, 1], [], []>} : vector<32x128xbf16>, vector<128x128xbf16>, vector<32x128xf32> -> vector<32x128xf32>
    %c0_15 = arith.constant 0 : index
    %c0_16 = arith.constant 0 : index
    %16 = vector.load %arg9[%c0_15, %c0_16] : memref<1x128xf32, #tpu.memory_space<vmem>>, vector<1x128xf32>
    %17 = vector.broadcast %16 : vector<1x128xf32> to vector<32x128xf32>
    %18 = arith.addf %15, %17 : vector<32x128xf32>
    %c0_17 = arith.constant 0 : index
    %c0_18 = arith.constant 0 : index
    %19 = vector.load %arg6[%c0_17, %c0_18] : memref<128x128xbf16, #tpu.memory_space<vmem>>, vector<128x128xbf16>
    %cst_19 = arith.constant dense<0.000000e+00> : vector<32x128xf32>
    %20 = tpu.matmul %8, %19, %cst_19 {dimension_numbers = #tpu.dot_dimension_numbers<[1], [0], [0], [1], [0, 0, 1, 1], [], []>} : vector<32x128xbf16>, vector<128x128xbf16>, vector<32x128xf32> -> vector<32x128xf32>
    %c0_20 = arith.constant 0 : index
    %c0_21 = arith.constant 0 : index
    %21 = vector.load %arg10[%c0_20, %c0_21] : memref<1x128xf32, #tpu.memory_space<vmem>>, vector<1x128xf32>
    %22 = vector.broadcast %21 : vector<1x128xf32> to vector<32x128xf32>
    %23 = arith.addf %20, %22 : vector<32x128xf32>
    %cst_22 = arith.constant 0.176776692 : f32
    %24 = vector.broadcast %cst_22 : f32 to vector<32x128xf32>
    %25 = arith.mulf %13, %24 : vector<32x128xf32>
    %26 = vector.extract_strided_slice %25 {offsets = [0, 0], sizes = [32, 32], strides = [1, 1]} : vector<32x128xf32> to vector<32x32xf32>
    %27 = arith.truncf %26 : vector<32x32xf32> to vector<32x32xbf16>
    %28 = vector.extract_strided_slice %18 {offsets = [0, 0], sizes = [32, 32], strides = [1, 1]} : vector<32x128xf32> to vector<32x32xf32>
    %29 = arith.truncf %28 : vector<32x32xf32> to vector<32x32xbf16>
    %30 = vector.extract_strided_slice %23 {offsets = [0, 0], sizes = [32, 32], strides = [1, 1]} : vector<32x128xf32> to vector<32x32xf32>
    %31 = arith.truncf %30 : vector<32x32xf32> to vector<32x32xbf16>
    %cst_23 = arith.constant dense<0.000000e+00> : vector<32x32xf32>
    %32 = tpu.matmul %27, %29, %cst_23 {dimension_numbers = #tpu.dot_dimension_numbers<[1], [1], [0], [0], [0, 0, 1, 0], [], []>} : vector<32x32xbf16>, vector<32x32xbf16>, vector<32x32xf32> -> vector<32x32xf32>
    %cst_24 = arith.constant dense<0xFF800000> : vector<32xf32>
    %33 = vector.multi_reduction <maximumf>, %32, %cst_24 [1] : vector<32x32xf32> to vector<32xf32>
    %34 = vector.shape_cast %33 : vector<32xf32> to vector<32x1xf32>
    %35 = vector.broadcast %34 : vector<32x1xf32> to vector<32x32xf32>
    %36 = arith.subf %32, %35 : vector<32x32xf32>
    %37 = math.exp %36 : vector<32x32xf32>
    %cst_25 = arith.constant dense<0.000000e+00> : vector<32xf32>
    %38 = vector.multi_reduction <add>, %37, %cst_25 [1] : vector<32x32xf32> to vector<32xf32>
    %39 = vector.shape_cast %38 : vector<32xf32> to vector<32x1xf32>
    %40 = tpu.reciprocal %39 {approx = true} : vector<32x1xf32> -> vector<32x1xf32>
    %41 = vector.broadcast %40 : vector<32x1xf32> to vector<32x32xf32>
    %42 = arith.mulf %37, %41 : vector<32x32xf32>
    %43 = arith.truncf %42 : vector<32x32xf32> to vector<32x32xbf16>
    %cst_26 = arith.constant dense<0.000000e+00> : vector<32x32xf32>
    %44 = tpu.matmul %43, %31, %cst_26 {dimension_numbers = #tpu.dot_dimension_numbers<[1], [0], [0], [1], [0, 0, 1, 1], [], []>} : vector<32x32xbf16>, vector<32x32xbf16>, vector<32x32xf32> -> vector<32x32xf32>
    %45 = vector.extract_strided_slice %25 {offsets = [0, 32], sizes = [32, 32], strides = [1, 1]} : vector<32x128xf32> to vector<32x32xf32>
    %46 = arith.truncf %45 : vector<32x32xf32> to vector<32x32xbf16>
    %47 = vector.extract_strided_slice %18 {offsets = [0, 32], sizes = [32, 32], strides = [1, 1]} : vector<32x128xf32> to vector<32x32xf32>
    %48 = arith.truncf %47 : vector<32x32xf32> to vector<32x32xbf16>
    %49 = vector.extract_strided_slice %23 {offsets = [0, 32], sizes = [32, 32], strides = [1, 1]} : vector<32x128xf32> to vector<32x32xf32>
    %50 = arith.truncf %49 : vector<32x32xf32> to vector<32x32xbf16>
    %cst_27 = arith.constant dense<0.000000e+00> : vector<32x32xf32>
    %51 = tpu.matmul %46, %48, %cst_27 {dimension_numbers = #tpu.dot_dimension_numbers<[1], [1], [0], [0], [0, 0, 1, 0], [], []>} : vector<32x32xbf16>, vector<32x32xbf16>, vector<32x32xf32> -> vector<32x32xf32>
    %cst_28 = arith.constant dense<0xFF800000> : vector<32xf32>
    %52 = vector.multi_reduction <maximumf>, %51, %cst_28 [1] : vector<32x32xf32> to vector<32xf32>
    %53 = vector.shape_cast %52 : vector<32xf32> to vector<32x1xf32>
    %54 = vector.broadcast %53 : vector<32x1xf32> to vector<32x32xf32>
    %55 = arith.subf %51, %54 : vector<32x32xf32>
    %56 = math.exp %55 : vector<32x32xf32>
    %cst_29 = arith.constant dense<0.000000e+00> : vector<32xf32>
    %57 = vector.multi_reduction <add>, %56, %cst_29 [1] : vector<32x32xf32> to vector<32xf32>
    %58 = vector.shape_cast %57 : vector<32xf32> to vector<32x1xf32>
    %59 = tpu.reciprocal %58 {approx = true} : vector<32x1xf32> -> vector<32x1xf32>
    %60 = vector.broadcast %59 : vector<32x1xf32> to vector<32x32xf32>
    %61 = arith.mulf %56, %60 : vector<32x32xf32>
    %62 = arith.truncf %61 : vector<32x32xf32> to vector<32x32xbf16>
    %cst_30 = arith.constant dense<0.000000e+00> : vector<32x32xf32>
    %63 = tpu.matmul %62, %50, %cst_30 {dimension_numbers = #tpu.dot_dimension_numbers<[1], [0], [0], [1], [0, 0, 1, 1], [], []>} : vector<32x32xbf16>, vector<32x32xbf16>, vector<32x32xf32> -> vector<32x32xf32>
    %64 = vector.extract_strided_slice %25 {offsets = [0, 64], sizes = [32, 32], strides = [1, 1]} : vector<32x128xf32> to vector<32x32xf32>
    %65 = arith.truncf %64 : vector<32x32xf32> to vector<32x32xbf16>
    %66 = vector.extract_strided_slice %18 {offsets = [0, 64], sizes = [32, 32], strides = [1, 1]} : vector<32x128xf32> to vector<32x32xf32>
    %67 = arith.truncf %66 : vector<32x32xf32> to vector<32x32xbf16>
    %68 = vector.extract_strided_slice %23 {offsets = [0, 64], sizes = [32, 32], strides = [1, 1]} : vector<32x128xf32> to vector<32x32xf32>
    %69 = arith.truncf %68 : vector<32x32xf32> to vector<32x32xbf16>
    %cst_31 = arith.constant dense<0.000000e+00> : vector<32x32xf32>
    %70 = tpu.matmul %65, %67, %cst_31 {dimension_numbers = #tpu.dot_dimension_numbers<[1], [1], [0], [0], [0, 0, 1, 0], [], []>} : vector<32x32xbf16>, vector<32x32xbf16>, vector<32x32xf32> -> vector<32x32xf32>
    %cst_32 = arith.constant dense<0xFF800000> : vector<32xf32>
    %71 = vector.multi_reduction <maximumf>, %70, %cst_32 [1] : vector<32x32xf32> to vector<32xf32>
    %72 = vector.shape_cast %71 : vector<32xf32> to vector<32x1xf32>
    %73 = vector.broadcast %72 : vector<32x1xf32> to vector<32x32xf32>
    %74 = arith.subf %70, %73 : vector<32x32xf32>
    %75 = math.exp %74 : vector<32x32xf32>
    %cst_33 = arith.constant dense<0.000000e+00> : vector<32xf32>
    %76 = vector.multi_reduction <add>, %75, %cst_33 [1] : vector<32x32xf32> to vector<32xf32>
    %77 = vector.shape_cast %76 : vector<32xf32> to vector<32x1xf32>
    %78 = tpu.reciprocal %77 {approx = true} : vector<32x1xf32> -> vector<32x1xf32>
    %79 = vector.broadcast %78 : vector<32x1xf32> to vector<32x32xf32>
    %80 = arith.mulf %75, %79 : vector<32x32xf32>
    %81 = arith.truncf %80 : vector<32x32xf32> to vector<32x32xbf16>
    %cst_34 = arith.constant dense<0.000000e+00> : vector<32x32xf32>
    %82 = tpu.matmul %81, %69, %cst_34 {dimension_numbers = #tpu.dot_dimension_numbers<[1], [0], [0], [1], [0, 0, 1, 1], [], []>} : vector<32x32xbf16>, vector<32x32xbf16>, vector<32x32xf32> -> vector<32x32xf32>
    %83 = vector.extract_strided_slice %25 {offsets = [0, 96], sizes = [32, 32], strides = [1, 1]} : vector<32x128xf32> to vector<32x32xf32>
    %84 = arith.truncf %83 : vector<32x32xf32> to vector<32x32xbf16>
    %85 = vector.extract_strided_slice %18 {offsets = [0, 96], sizes = [32, 32], strides = [1, 1]} : vector<32x128xf32> to vector<32x32xf32>
    %86 = arith.truncf %85 : vector<32x32xf32> to vector<32x32xbf16>
    %87 = vector.extract_strided_slice %23 {offsets = [0, 96], sizes = [32, 32], strides = [1, 1]} : vector<32x128xf32> to vector<32x32xf32>
    %88 = arith.truncf %87 : vector<32x32xf32> to vector<32x32xbf16>
    %cst_35 = arith.constant dense<0.000000e+00> : vector<32x32xf32>
    %89 = tpu.matmul %84, %86, %cst_35 {dimension_numbers = #tpu.dot_dimension_numbers<[1], [1], [0], [0], [0, 0, 1, 0], [], []>} : vector<32x32xbf16>, vector<32x32xbf16>, vector<32x32xf32> -> vector<32x32xf32>
    %cst_36 = arith.constant dense<0xFF800000> : vector<32xf32>
    %90 = vector.multi_reduction <maximumf>, %89, %cst_36 [1] : vector<32x32xf32> to vector<32xf32>
    %91 = vector.shape_cast %90 : vector<32xf32> to vector<32x1xf32>
    %92 = vector.broadcast %91 : vector<32x1xf32> to vector<32x32xf32>
    %93 = arith.subf %89, %92 : vector<32x32xf32>
    %94 = math.exp %93 : vector<32x32xf32>
    %cst_37 = arith.constant dense<0.000000e+00> : vector<32xf32>
    %95 = vector.multi_reduction <add>, %94, %cst_37 [1] : vector<32x32xf32> to vector<32xf32>
    %96 = vector.shape_cast %95 : vector<32xf32> to vector<32x1xf32>
    %97 = tpu.reciprocal %96 {approx = true} : vector<32x1xf32> -> vector<32x1xf32>
    %98 = vector.broadcast %97 : vector<32x1xf32> to vector<32x32xf32>
    %99 = arith.mulf %94, %98 : vector<32x32xf32>
    %100 = arith.truncf %99 : vector<32x32xf32> to vector<32x32xbf16>
    %cst_38 = arith.constant dense<0.000000e+00> : vector<32x32xf32>
    %101 = tpu.matmul %100, %88, %cst_38 {dimension_numbers = #tpu.dot_dimension_numbers<[1], [0], [0], [1], [0, 0, 1, 1], [], []>} : vector<32x32xbf16>, vector<32x32xbf16>, vector<32x32xf32> -> vector<32x32xf32>
    %102 = tpu.concatenate %44, %63, %82, %101 in 1 : vector<32x32xf32>, vector<32x32xf32>, vector<32x32xf32>, vector<32x32xf32> -> vector<32x128xf32>
    %103 = arith.truncf %102 : vector<32x128xf32> to vector<32x128xbf16>
    %c0_39 = arith.constant 0 : index
    %c0_40 = arith.constant 0 : index
    %104 = vector.load %arg7[%c0_39, %c0_40] : memref<128x128xbf16, #tpu.memory_space<vmem>>, vector<128x128xbf16>
    %cst_41 = arith.constant dense<0.000000e+00> : vector<32x128xf32>
    %105 = tpu.matmul %103, %104, %cst_41 {dimension_numbers = #tpu.dot_dimension_numbers<[1], [0], [0], [1], [0, 0, 1, 1], [], []>} : vector<32x128xbf16>, vector<128x128xbf16>, vector<32x128xf32> -> vector<32x128xf32>
    %c0_42 = arith.constant 0 : index
    %c0_43 = arith.constant 0 : index
    %106 = vector.load %arg11[%c0_42, %c0_43] : memref<1x128xf32, #tpu.memory_space<vmem>>, vector<1x128xf32>
    %107 = vector.broadcast %106 : vector<1x128xf32> to vector<32x128xf32>
    %108 = arith.addf %105, %107 : vector<32x128xf32>
    %109 = vector.shape_cast %108 : vector<32x128xf32> to vector<1x32x128xf32>
    %c0_44 = arith.constant 0 : index
    %c0_45 = arith.constant 0 : index
    %c0_46 = arith.constant 0 : index
    %110 = vector.load %arg12[%c0_44, %c0_45, %c0_46] : memref<1x32x128xf32, #tpu.memory_space<vmem>>, vector<1x32x128xf32>
    tpu.vector_store %arg12[%c0_44, %c0_45, %c0_46], %109 {strides = array<i32>} : memref<1x32x128xf32, #tpu.memory_space<vmem>>, vector<1x32x128xf32>,
    return
  }
  func.func @transform_0(%arg0: i32) -> (i32, i32, i32) {
    %c0_i32 = arith.constant 0 : i32
    %c0_i32_0 = arith.constant 0 : i32
    %c0_i32_1 = arith.constant 0 : i32
    return %arg0, %c0_i32, %c0_i32_0 : i32, i32, i32
  }
  func.func @transform_1(%arg0: i32) -> (i32, i32, i32) {
    %c0_i32 = arith.constant 0 : i32
    %c0_i32_0 = arith.constant 0 : i32
    %c0_i32_1 = arith.constant 0 : i32
    return %arg0, %c0_i32, %c0_i32_0 : i32, i32, i32
  }
  func.func @transform_2(%arg0: i32) -> (i32, i32, i32) {
    %c0_i32 = arith.constant 0 : i32
    %c0_i32_0 = arith.constant 0 : i32
    %c0_i32_1 = arith.constant 0 : i32
    return %arg0, %c0_i32, %c0_i32_0 : i32, i32, i32
  }
  func.func @transform_3(%arg0: i32) -> (i32, i32) {
    %c0_i32 = arith.constant 0 : i32
    %c0_i32_0 = arith.constant 0 : i32
    %c0_i32_1 = arith.constant 0 : i32
    return %c0_i32, %c0_i32_0 : i32, i32
  }
  func.func @transform_4(%arg0: i32) -> (i32, i32) {
    %c0_i32 = arith.constant 0 : i32
    %c0_i32_0 = arith.constant 0 : i32
    %c0_i32_1 = arith.constant 0 : i32
    return %c0_i32, %c0_i32_0 : i32, i32
  }
  func.func @transform_5(%arg0: i32) -> (i32, i32) {
    %c0_i32 = arith.constant 0 : i32
    %c0_i32_0 = arith.constant 0 : i32
    %c0_i32_1 = arith.constant 0 : i32
    return %c0_i32, %c0_i32_0 : i32, i32
  }
  func.func @transform_6(%arg0: i32) -> (i32, i32) {
    %c0_i32 = arith.constant 0 : i32
    %c0_i32_0 = arith.constant 0 : i32
    %c0_i32_1 = arith.constant 0 : i32
    return %c0_i32, %c0_i32_0 : i32, i32
  }
  func.func @transform_7(%arg0: i32) -> (i32, i32) {
    %c0_i32 = arith.constant 0 : i32
    %c0_i32_0 = arith.constant 0 : i32
    %c0_i32_1 = arith.constant 0 : i32
    return %c0_i32, %c0_i32_0 : i32, i32
  }
  func.func @transform_8(%arg0: i32) -> (i32, i32) {
    %c0_i32 = arith.constant 0 : i32
    %c0_i32_0 = arith.constant 0 : i32
    %c0_i32_1 = arith.constant 0 : i32
    return %c0_i32, %c0_i32_0 : i32, i32
  }
  func.func @transform_9(%arg0: i32) -> (i32, i32) {
    %c0_i32 = arith.constant 0 : i32
    %c0_i32_0 = arith.constant 0 : i32
    %c0_i32_1 = arith.constant 0 : i32
    return %c0_i32, %c0_i32_0 : i32, i32
  }
  func.func @transform_10(%arg0: i32) -> (i32, i32) {
    %c0_i32 = arith.constant 0 : i32
    %c0_i32_0 = arith.constant 0 : i32
    %c0_i32_1 = arith.constant 0 : i32
    return %c0_i32, %c0_i32_0 : i32, i32
  }
  func.func @transform_11(%arg0: i32) -> (i32, i32, i32) {
    %c0_i32 = arith.constant 0 : i32
    %c0_i32_0 = arith.constant 0 : i32
    %c0_i32_1 = arith.constant 0 : i32
    return %arg0, %c0_i32, %c0_i32_0 : i32, i32, i32
  }
}

</mosaic_0001>

<llo_original>
// kernel: _lambda_.1
$region0: #{_lambda_.1}
  #allocation0 [shape = 'u32[]', space=smem, size = 0x4, offset = 0x4, fixed_abs, tag = 'smem constant byte address 0x4 - core index']
  #allocation1 [shape = 'u32[144,128]{1,0:T(1,128)}', space=vmem, size = 0x12000, scoped, tag = 'internal scratch']
  %s0 = inlined_call_operand.hbm [shape: f32[2,32,128], index: 0, kind: input, shape index: {}]
  %s1 = inlined_call_operand.hbm [shape: f32[2,32,128], index: 1, kind: input, shape index: {}]
  %s2 = inlined_call_operand.hbm [shape: f32[2,32,128], index: 2, kind: input, shape index: {}]
  %s3 = inlined_call_operand.hbm [shape: bf16[128,128], index: 3, kind: input, shape index: {}]
  %s4 = inlined_call_operand.hbm [shape: bf16[128,128], index: 4, kind: input, shape index: {}]
  %s5 = inlined_call_operand.hbm [shape: bf16[128,128], index: 5, kind: input, shape index: {}]
  %s6 = inlined_call_operand.hbm [shape: bf16[128,128], index: 6, kind: input, shape index: {}]
  %s7 = inlined_call_operand.vmem [shape: f32[1,128], index: 7, kind: input, shape index: {}]
  %s8 = inlined_call_operand.vmem [shape: f32[1,128], index: 8, kind: input, shape index: {}]
  %s9 = inlined_call_operand.vmem [shape: f32[1,128], index: 9, kind: input, shape index: {}]
  %s10 = inlined_call_operand.vmem [shape: f32[1,128], index: 10, kind: input, shape index: {}]
  %s11 = inlined_call_operand.hbm [shape: f32[2,32,128], index: 11, kind: output, shape index: {}]
  %s12 = sld [smem:[#allocation0]]
  $region105: #{_lambda_.1} parent=0
    _
  %s14 = ssub.s32 1, %s12
  %s15 = scalar_select 0, %s14, %s12
  $region1: #{_lambda_.1} parent=0
    #allocation2 [shape = 'u8[32768]{0}', space=vmem, size = 0x8000, scoped, tag = 'input window, operand 0']
    #allocation3 [shape = 's32[2]{0}', space=sflag, size = 0x8, scoped, tag = 'scoped memory for _lambda_.1']
    #allocation4 [shape = 's32[2]{0}', space=sflag, size = 0x8, scoped, tag = 'scoped memory for _lambda_.1']
    #allocation5 [shape = 'u8[32768]{0}', space=vmem, size = 0x8000, scoped, tag = 'input window, operand 1']
    #allocation6 [shape = 's32[2]{0}', space=sflag, size = 0x8, scoped, tag = 'scoped memory for _lambda_.1']
    #allocation7 [shape = 'u8[32768]{0}', space=vmem, size = 0x8000, scoped, tag = 'input window, operand 2']
    #allocation8 [shape = 'u8[32768]{0}', space=vmem, size = 0x8000, scoped, tag = 'input window, operand 3, single buffered']
    #allocation9 [shape = 's32[1]{0}', space=sflag, size = 0x4, scoped, tag = 'scoped memory for _lambda_.1']
    #allocation10 [shape = 'u8[32768]{0}', space=vmem, size = 0x8000, scoped, tag = 'input window, operand 4, single buffered']
    #allocation11 [shape = 'u8[32768]{0}', space=vmem, size = 0x8000, scoped, tag = 'input window, operand 5, single buffered']
    #allocation12 [shape = 's32[1]{0}', space=sflag, size = 0x4, scoped, tag = 'scoped memory for _lambda_.1']
    #allocation13 [shape = 'u8[32768]{0}', space=vmem, size = 0x8000, scoped, tag = 'input window, operand 6, single buffered']
    #allocation14 [shape = 'u8[32768]{0}', space=vmem, size = 0x8000, scoped, tag = 'output window, operand 0']
    %16 = vsyncpa [#allocation3], 0
    %s17 = scalar_lea.sflag [#allocation3], 1
    %18 = vsyncpa %s17, 0
    %19 = vsyncpa [#allocation6], 0
    %s20 = scalar_lea.sflag [#allocation6], 1
    %21 = vsyncpa %s20, 0
    %22 = vsyncpa [#allocation9], 0
    %23 = vsyncpa [#allocation12], 0
    %24 = vsyncpa [#allocation4], 0
    %s25 = scalar_lea.sflag [#allocation4], 1
    %26 = vsyncpa %s25, 0
    loop: start=0, step=1, limit=4
    $region2: #{_lambda_.1} parent=1 // loop_pre_header
      _
    $region3: #{_lambda_.1} parent=1 // loop_header
      %s28 = sphi 0, %s32
      %p29 = scmp.ge.s32.totalorder %s28, 4
      %s38 = sphi 0, %s40
      %s41 = sphi 0, %s38
      %s42 = sphi 0, %s41
      %s58 = sphi 0, %s42
      %s64 = sphi 0, %s66
      %s67 = sphi 0, %s64
      %s68 = sphi 0, %s67
      %s84 = sphi 0, %s68
      %s90 = sphi 0, %s92
      %s93 = sphi 0, %s90
      %s94 = sphi 0, %s93
      %s110 = sphi 0, %s94
      %s114 = sphi 0, %s114
      %s116 = sphi 0, %s114
      %s117 = sphi 0, %s116
      %s131 = sphi 0, %s117
      %s135 = sphi 0, %s135
      %s137 = sphi 0, %s135
      %s138 = sphi 0, %s137
      %s152 = sphi 0, %s138
      %s156 = sphi 0, %s156
      %s158 = sphi 0, %s156
      %s159 = sphi 0, %s158
      %s173 = sphi 0, %s159
      %s177 = sphi 0, %s177
      %s179 = sphi 0, %s177
      %s180 = sphi 0, %s179
      %s194 = sphi 0, %s180
      %s198 = sphi 0, %s198
      %s200 = sphi 0, %s198
      %s201 = sphi 0, %s200
      %s215 = sphi 0, %s201
      %s219 = sphi 0, %s219
      %s221 = sphi 0, %s219
      %s222 = sphi 0, %s221
      %s236 = sphi 0, %s222
      %s240 = sphi 0, %s240
      %s242 = sphi 0, %s240
      %s243 = sphi 0, %s242
      %s257 = sphi 0, %s243
      %s261 = sphi 0, %s261
      %s263 = sphi 0, %s261
      %s264 = sphi 0, %s263
      %s278 = sphi 0, %s264
      %s284 = sphi 0, %s286
      %s287 = sphi 0, %s284
      %s288 = sphi 0, %s287
      %s304 = sphi 0, %s288
    $region4: #{_lambda_.1} parent=1 // loop_header_branch
      %31 = sbr.rel (%p29) target = $region8
    $region5: #{_lambda_.1} parent=1 // loop_body
      %s33 = ssub.s32 %s28, 1
      %s34 = ssub.s32 %s28, 2
      %s35 = sadd.s32 %s28, 1
      %s36 = ssub.s32 %s28, %s35
      %p37 = scmp.eq.s32.totalorder %s36, 0
      %s39 = sadd.s32 %s38, 1
      %s40 = scalar_select %p37, %s38, %s39
      %p43 = pneg %p37
      %p44 = scmp.eq.s32.totalorder %s28, 1
      %p45 = por %p43, %p44
      %p46 = scmp.ne.s32.totalorder %s38, %s41
      %p47 = scmp.eq.s32.totalorder %s28, 0
      %p48 = por %p46, %p47
      %p49 = scmp.ne.s32.totalorder %s38, %s41
      %p50 = scmp.eq.s32.totalorder %s33, 1
      %p51 = por %p49, %p50
      %p52 = scmp.ne.s32.totalorder %s41, %s42
      %p53 = scmp.eq.s32.totalorder %s33, 0
      %p54 = por %p52, %p53
      %p55 = scmp.ne.s32.totalorder %s41, %s42
      %p56 = scmp.eq.s32.totalorder %s34, 1
      %p57 = por %p55, %p56
      %p59 = scmp.ne.s32.totalorder %s42, %s58
      %p60 = scmp.eq.s32.totalorder %s34, 0
      %p61 = por %p59, %p60
      %s62 = ssub.s32 %s28, %s35
      %p63 = scmp.eq.s32.totalorder %s62, 0
      %s65 = sadd.s32 %s64, 1
      %s66 = scalar_select %p63, %s64, %s65
      %p69 = pneg %p63
      %p70 = scmp.eq.s32.totalorder %s28, 1
      %p71 = por %p69, %p70
      %p72 = scmp.ne.s32.totalorder %s64, %s67
      %p73 = scmp.eq.s32.totalorder %s28, 0
      %p74 = por %p72, %p73
      %p75 = scmp.ne.s32.totalorder %s64, %s67
      %p76 = scmp.eq.s32.totalorder %s33, 1
      %p77 = por %p75, %p76
      %p78 = scmp.ne.s32.totalorder %s67, %s68
      %p79 = scmp.eq.s32.totalorder %s33, 0
      %p80 = por %p78, %p79
      %p81 = scmp.ne.s32.totalorder %s67, %s68
      %p82 = scmp.eq.s32.totalorder %s34, 1
      %p83 = por %p81, %p82
      %p85 = scmp.ne.s32.totalorder %s68, %s84
      %p86 = scmp.eq.s32.totalorder %s34, 0
      %p87 = por %p85, %p86
      %s88 = ssub.s32 %s28, %s35
      %p89 = scmp.eq.s32.totalorder %s88, 0
      %s91 = sadd.s32 %s90, 1
      %s92 = scalar_select %p89, %s90, %s91
      %p95 = pneg %p89
      %p96 = scmp.eq.s32.totalorder %s28, 1
      %p97 = por %p95, %p96
      %p98 = scmp.ne.s32.totalorder %s90, %s93
      %p99 = scmp.eq.s32.totalorder %s28, 0
      %p100 = por %p98, %p99
      %p101 = scmp.ne.s32.totalorder %s90, %s93
      %p102 = scmp.eq.s32.totalorder %s33, 1
      %p103 = por %p101, %p102
      %p104 = scmp.ne.s32.totalorder %s93, %s94
      %p105 = scmp.eq.s32.totalorder %s33, 0
      %p106 = por %p104, %p105
      %p107 = scmp.ne.s32.totalorder %s93, %s94
      %p108 = scmp.eq.s32.totalorder %s34, 1
      %p109 = por %p107, %p108
      %p111 = scmp.ne.s32.totalorder %s94, %s110
      %p112 = scmp.eq.s32.totalorder %s34, 0
      %p113 = por %p111, %p112
      %s115 = sadd.s32 %s114, 1
      %p118 = scmp.eq.s32.totalorder %s28, 1
      %p119 = scmp.ne.s32.totalorder %s114, %s116
      %p120 = scmp.eq.s32.totalorder %s28, 0
      %p121 = por %p119, %p120
      %p122 = scmp.ne.s32.totalorder %s114, %s116
      %p123 = scmp.eq.s32.totalorder %s33, 1
      %p124 = por %p122, %p123
      %p125 = scmp.ne.s32.totalorder %s116, %s117
      %p126 = scmp.eq.s32.totalorder %s33, 0
      %p127 = por %p125, %p126
      %p128 = scmp.ne.s32.totalorder %s116, %s117
      %p129 = scmp.eq.s32.totalorder %s34, 1
      %p130 = por %p128, %p129
      %p132 = scmp.ne.s32.totalorder %s117, %s131
      %p133 = scmp.eq.s32.totalorder %s34, 0
      %p134 = por %p132, %p133
      %s136 = sadd.s32 %s135, 1
      %p139 = scmp.eq.s32.totalorder %s28, 1
      %p140 = scmp.ne.s32.totalorder %s135, %s137
      %p141 = scmp.eq.s32.totalorder %s28, 0
      %p142 = por %p140, %p141
      %p143 = scmp.ne.s32.totalorder %s135, %s137
      %p144 = scmp.eq.s32.totalorder %s33, 1
      %p145 = por %p143, %p144
      %p146 = scmp.ne.s32.totalorder %s137, %s138
      %p147 = scmp.eq.s32.totalorder %s33, 0
      %p148 = por %p146, %p147
      %p149 = scmp.ne.s32.totalorder %s137, %s138
      %p150 = scmp.eq.s32.totalorder %s34, 1
      %p151 = por %p149, %p150
      %p153 = scmp.ne.s32.totalorder %s138, %s152
      %p154 = scmp.eq.s32.totalorder %s34, 0
      %p155 = por %p153, %p154
      %s157 = sadd.s32 %s156, 1
      %p160 = scmp.eq.s32.totalorder %s28, 1
      %p161 = scmp.ne.s32.totalorder %s156, %s158
      %p162 = scmp.eq.s32.totalorder %s28, 0
      %p163 = por %p161, %p162
      %p164 = scmp.ne.s32.totalorder %s156, %s158
      %p165 = scmp.eq.s32.totalorder %s33, 1
      %p166 = por %p164, %p165
      %p167 = scmp.ne.s32.totalorder %s158, %s159
      %p168 = scmp.eq.s32.totalorder %s33, 0
      %p169 = por %p167, %p168
      %p170 = scmp.ne.s32.totalorder %s158, %s159
      %p171 = scmp.eq.s32.totalorder %s34, 1
      %p172 = por %p170, %p171
      %p174 = scmp.ne.s32.totalorder %s159, %s173
      %p175 = scmp.eq.s32.totalorder %s34, 0
      %p176 = por %p174, %p175
      %s178 = sadd.s32 %s177, 1
      %p181 = scmp.eq.s32.totalorder %s28, 1
      %p182 = scmp.ne.s32.totalorder %s177, %s179
      %p183 = scmp.eq.s32.totalorder %s28, 0
      %p184 = por %p182, %p183
      %p185 = scmp.ne.s32.totalorder %s177, %s179
      %p186 = scmp.eq.s32.totalorder %s33, 1
      %p187 = por %p185, %p186
      %p188 = scmp.ne.s32.totalorder %s179, %s180
      %p189 = scmp.eq.s32.totalorder %s33, 0
      %p190 = por %p188, %p189
      %p191 = scmp.ne.s32.totalorder %s179, %s180
      %p192 = scmp.eq.s32.totalorder %s34, 1
      %p193 = por %p191, %p192
      %p195 = scmp.ne.s32.totalorder %s180, %s194
      %p196 = scmp.eq.s32.totalorder %s34, 0
      %p197 = por %p195, %p196
      %s199 = sadd.s32 %s198, 1
      %p202 = scmp.eq.s32.totalorder %s28, 1
      %p203 = scmp.ne.s32.totalorder %s198, %s200
      %p204 = scmp.eq.s32.totalorder %s28, 0
      %p205 = por %p203, %p204
      %p206 = scmp.ne.s32.totalorder %s198, %s200
      %p207 = scmp.eq.s32.totalorder %s33, 1
      %p208 = por %p206, %p207
      %p209 = scmp.ne.s32.totalorder %s200, %s201
      %p210 = scmp.eq.s32.totalorder %s33, 0
      %p211 = por %p209, %p210
      %p212 = scmp.ne.s32.totalorder %s200, %s201
      %p213 = scmp.eq.s32.totalorder %s34, 1
      %p214 = por %p212, %p213
      %p216 = scmp.ne.s32.totalorder %s201, %s215
      %p217 = scmp.eq.s32.totalorder %s34, 0
      %p218 = por %p216, %p217
      %s220 = sadd.s32 %s219, 1
      %p223 = scmp.eq.s32.totalorder %s28, 1
      %p224 = scmp.ne.s32.totalorder %s219, %s221
      %p225 = scmp.eq.s32.totalorder %s28, 0
      %p226 = por %p224, %p225
      %p227 = scmp.ne.s32.totalorder %s219, %s221
      %p228 = scmp.eq.s32.totalorder %s33, 1
      %p229 = por %p227, %p228
      %p230 = scmp.ne.s32.totalorder %s221, %s222
      %p231 = scmp.eq.s32.totalorder %s33, 0
      %p232 = por %p230, %p231
      %p233 = scmp.ne.s32.totalorder %s221, %s222
      %p234 = scmp.eq.s32.totalorder %s34, 1
      %p235 = por %p233, %p234
      %p237 = scmp.ne.s32.totalorder %s222, %s236
      %p238 = scmp.eq.s32.totalorder %s34, 0
      %p239 = por %p237, %p238
      %s241 = sadd.s32 %s240, 1
      %p244 = scmp.eq.s32.totalorder %s28, 1
      %p245 = scmp.ne.s32.totalorder %s240, %s242
      %p246 = scmp.eq.s32.totalorder %s28, 0
      %p247 = por %p245, %p246
      %p248 = scmp.ne.s32.totalorder %s240, %s242
      %p249 = scmp.eq.s32.totalorder %s33, 1
      %p250 = por %p248, %p249
      %p251 = scmp.ne.s32.totalorder %s242, %s243
      %p252 = scmp.eq.s32.totalorder %s33, 0
      %p253 = por %p251, %p252
      %p254 = scmp.ne.s32.totalorder %s242, %s243
      %p255 = scmp.eq.s32.totalorder %s34, 1
      %p256 = por %p254, %p255
      %p258 = scmp.ne.s32.totalorder %s243, %s257
      %p259 = scmp.eq.s32.totalorder %s34, 0
      %p260 = por %p258, %p259
      %s262 = sadd.s32 %s261, 1
      %p265 = scmp.eq.s32.totalorder %s28, 1
      %p266 = scmp.ne.s32.totalorder %s261, %s263
      %p267 = scmp.eq.s32.totalorder %s28, 0
      %p268 = por %p266, %p267
      %p269 = scmp.ne.s32.totalorder %s261, %s263
      %p270 = scmp.eq.s32.totalorder %s33, 1
      %p271 = por %p269, %p270
      %p272 = scmp.ne.s32.totalorder %s263, %s264
      %p273 = scmp.eq.s32.totalorder %s33, 0
      %p274 = por %p272, %p273
      %p275 = scmp.ne.s32.totalorder %s263, %s264
      %p276 = scmp.eq.s32.totalorder %s34, 1
      %p277 = por %p275, %p276
      %p279 = scmp.ne.s32.totalorder %s264, %s278
      %p280 = scmp.eq.s32.totalorder %s34, 0
      %p281 = por %p279, %p280
      %s282 = ssub.s32 %s28, %s35
      %p283 = scmp.eq.s32.totalorder %s282, 0
      %s285 = sadd.s32 %s284, 1
      %s286 = scalar_select %p283, %s284, %s285
      %p289 = pneg %p283
      %p290 = scmp.eq.s32.totalorder %s28, 1
      %p291 = por %p289, %p290
      %p292 = scmp.ne.s32.totalorder %s284, %s287
      %p293 = scmp.eq.s32.totalorder %s28, 0
      %p294 = por %p292, %p293
      %p295 = scmp.ne.s32.totalorder %s284, %s287
      %p296 = scmp.eq.s32.totalorder %s33, 1
      %p297 = por %p295, %p296
      %p298 = scmp.ne.s32.totalorder %s287, %s288
      %p299 = scmp.eq.s32.totalorder %s33, 0
      %p300 = por %p298, %p299
      %p301 = scmp.ne.s32.totalorder %s287, %s288
      %p302 = scmp.eq.s32.totalorder %s34, 1
      %p303 = por %p301, %p302
      %p305 = scmp.ne.s32.totalorder %s288, %s304
      %p306 = scmp.eq.s32.totalorder %s34, 0
      %p307 = por %p305, %p306
      %p308 = scmp.le.s32.totalorder 1, %s28
      %p309 = scmp.lt.s32.totalorder %s28, 3
      %p310 = pnand %p308, %p309
      %p311 = pneg %p310
      // Predicated region
      $region9: #{_lambda_.1} parent=5 // pred_check
        _
      $region10: #{_lambda_.1} parent=5 // pred_check_branch
        %313 = sbr.rel (%p310) target = $region12
      $region11: #{_lambda_.1} parent=5 // pred_region
        %s314 = ssub.s32 %s28, 1
        // Predicated region
        $region13: #{_lambda_.1} parent=11 // pred_check
          %p315 = pneg %p127
        $region14: #{_lambda_.1} parent=11 // pred_check_branch
          %317 = sbr.rel (%p315) target = $region16
        $region15: #{_lambda_.1} parent=11 // pred_region
          %s319 = ssub.s32 1024, 1024
          %320 = vsyncadd [#allocation9], %s319
          %s321 = sshll.u32 [#allocation8], 4
          %s322 = int_to_ptr.vmem [resolvable:$true] %s321
          %327 = dma.hbm_to_vmem [thread:$0]  %s3, 1024, %s322, [#allocation9], 64, 64, 4
        $region16: #{_lambda_.1} parent=11 // pred_fallthru
          _
        // Predicated region
        $region17: #{_lambda_.1} parent=11 // pred_check
          %p328 = pneg %p148
        $region18: #{_lambda_.1} parent=11 // pred_check_branch
          %330 = sbr.rel (%p328) target = $region20
        $region19: #{_lambda_.1} parent=11 // pred_region
          %s332 = ssub.s32 1024, 1024
          %333 = vsyncadd [#allocation9], %s332
          %s334 = sshll.u32 [#allocation10], 4
          %s335 = int_to_ptr.vmem [resolvable:$true] %s334
          %340 = dma.hbm_to_vmem [thread:$0]  %s4, 1024, %s335, [#allocation9], 64, 64, 4
        $region20: #{_lambda_.1} parent=11 // pred_fallthru
          _
        // Predicated region
        $region21: #{_lambda_.1} parent=11 // pred_check
          %p341 = pneg %p169
        $region22: #{_lambda_.1} parent=11 // pred_check_branch
          %343 = sbr.rel (%p341) target = $region24
        $region23: #{_lambda_.1} parent=11 // pred_region
          %s345 = ssub.s32 1024, 1024
          %346 = vsyncadd [#allocation12], %s345
          %s347 = sshll.u32 [#allocation11], 4
          %s348 = int_to_ptr.vmem [resolvable:$true] %s347
          %353 = dma.hbm_to_vmem [thread:$0]  %s5, 1024, %s348, [#allocation12], 64, 64, 4
        $region24: #{_lambda_.1} parent=11 // pred_fallthru
          _
        // Predicated region
        $region25: #{_lambda_.1} parent=11 // pred_check
          %p354 = pneg %p190
        $region26: #{_lambda_.1} parent=11 // pred_check_branch
          %356 = sbr.rel (%p354) target = $region28
        $region27: #{_lambda_.1} parent=11 // pred_region
          %s358 = ssub.s32 1024, 1024
          %359 = vsyncadd [#allocation12], %s358
          %s360 = sshll.u32 [#allocation13], 4
          %s361 = int_to_ptr.vmem [resolvable:$true] %s360
          %366 = dma.hbm_to_vmem [thread:$0]  %s6, 1024, %s361, [#allocation12], 64, 64, 4
        $region28: #{_lambda_.1} parent=11 // pred_fallthru
          _
        // Predicated region
        $region29: #{_lambda_.1} parent=11 // pred_check
          %p367 = pneg %p211
        $region30: #{_lambda_.1} parent=11 // pred_check_branch
          %369 = sbr.rel (%p367) target = $region32
        $region31: #{_lambda_.1} parent=11 // pred_region
          _
        $region32: #{_lambda_.1} parent=11 // pred_fallthru
          _
        // Predicated region
        $region33: #{_lambda_.1} parent=11 // pred_check
          %p370 = pneg %p232
        $region34: #{_lambda_.1} parent=11 // pred_check_branch
          %372 = sbr.rel (%p370) target = $region36
        $region35: #{_lambda_.1} parent=11 // pred_region
          _
        $region36: #{_lambda_.1} parent=11 // pred_fallthru
          _
        // Predicated region
        $region37: #{_lambda_.1} parent=11 // pred_check
          %p373 = pneg %p253
        $region38: #{_lambda_.1} parent=11 // pred_check_branch
          %375 = sbr.rel (%p373) target = $region40
        $region39: #{_lambda_.1} parent=11 // pred_region
          _
        $region40: #{_lambda_.1} parent=11 // pred_fallthru
          _
        // Predicated region
        $region41: #{_lambda_.1} parent=11 // pred_check
          %p376 = pneg %p274
        $region42: #{_lambda_.1} parent=11 // pred_check_branch
          %378 = sbr.rel (%p376) target = $region44
        $region43: #{_lambda_.1} parent=11 // pred_region
          _
        $region44: #{_lambda_.1} parent=11 // pred_fallthru
          _
      $region12: #{_lambda_.1} parent=5 // pred_fallthru
        _
      %p379 = scmp.lt.s32.totalorder %s28, 2
      // Predicated region
      $region45: #{_lambda_.1} parent=5 // pred_check
        %p380 = pneg %p379
      $region46: #{_lambda_.1} parent=5 // pred_check_branch
        %382 = sbr.rel (%p380) target = $region48
      $region47: #{_lambda_.1} parent=5 // pred_region
        // Predicated region
        $region49: #{_lambda_.1} parent=47 // pred_check
          %p383 = pneg %p48
        $region50: #{_lambda_.1} parent=47 // pred_check_branch
          %385 = sbr.rel (%p383) target = $region52
        $region51: #{_lambda_.1} parent=47 // pred_region
          %s386 = sand.u32 %s38, 1
          %s387 = scalar_lea.sflag [#allocation3], %s386
          %s388 = sand.u32 %s38, 1
          %s389 = smul.addr %s388, 32
          %s390 = scalar_lea.vmem [#allocation2], %s389
          %s392 = ssub.s32 512, 512
          %393 = vsyncadd %s387, %s392
          %s394 = smul.addr %s28, 4
          %s395 = smul.addr %s394, 128
          %s396 = scalar_lea.hbm %s0, %s395
          %s397 = sshll.u32 %s390, 4
          %s398 = int_to_ptr.vmem [resolvable:$true] %s397
          %403 = dma.hbm_to_vmem [thread:$0]  %s396, 512, %s398, %s387, 128, 128, 8
        $region52: #{_lambda_.1} parent=47 // pred_fallthru
          _
        // Predicated region
        $region53: #{_lambda_.1} parent=47 // pred_check
          %p404 = pneg %p74
        $region54: #{_lambda_.1} parent=47 // pred_check_branch
          %406 = sbr.rel (%p404) target = $region56
        $region55: #{_lambda_.1} parent=47 // pred_region
          %s407 = sand.u32 %s28, 1
          %s408 = scalar_lea.sflag [#allocation6], %s407
          %s409 = sand.u32 %s64, 1
          %s410 = smul.addr %s409, 32
          %s411 = scalar_lea.vmem [#allocation5], %s410
          %s413 = ssub.s32 512, 512
          %414 = vsyncadd %s408, %s413
          %s415 = smul.addr %s28, 4
          %s416 = smul.addr %s415, 128
          %s417 = scalar_lea.hbm %s1, %s416
          %s418 = sshll.u32 %s411, 4
          %s419 = int_to_ptr.vmem [resolvable:$true] %s418
          %424 = dma.hbm_to_vmem [thread:$0]  %s417, 512, %s419, %s408, 128, 128, 8
        $region56: #{_lambda_.1} parent=47 // pred_fallthru
          _
        // Predicated region
        $region57: #{_lambda_.1} parent=47 // pred_check
          %p425 = pneg %p100
        $region58: #{_lambda_.1} parent=47 // pred_check_branch
          %427 = sbr.rel (%p425) target = $region60
        $region59: #{_lambda_.1} parent=47 // pred_region
          %s428 = sand.u32 %s28, 1
          %s429 = scalar_lea.sflag [#allocation6], %s428
          %s430 = sand.u32 %s90, 1
          %s431 = smul.addr %s430, 32
          %s432 = scalar_lea.vmem [#allocation7], %s431
          %s434 = ssub.s32 512, 512
          %435 = vsyncadd %s429, %s434
          %s436 = smul.addr %s28, 4
          %s437 = smul.addr %s436, 128
          %s438 = scalar_lea.hbm %s2, %s437
          %s439 = sshll.u32 %s432, 4
          %s440 = int_to_ptr.vmem [resolvable:$true] %s439
          %445 = dma.hbm_to_vmem [thread:$0]  %s438, 512, %s440, %s429, 128, 128, 8
        $region60: #{_lambda_.1} parent=47 // pred_fallthru
          _
      $region48: #{_lambda_.1} parent=5 // pred_fallthru
        _
      %p446 = scmp.le.s32.totalorder 1, %s28
      %p447 = scmp.lt.s32.totalorder %s28, 3
      %p448 = pnand %p446, %p447
      %p449 = pneg %p448
      // Predicated region
      $region61: #{_lambda_.1} parent=5 // pred_check
        _
      $region62: #{_lambda_.1} parent=5 // pred_check_branch
        %451 = sbr.rel (%p448) target = $region64
      $region63: #{_lambda_.1} parent=5 // pred_region
        %s452 = ssub.s32 %s28, 1
        %s453 = sand.u32 %s41, 1
        %s454 = scalar_lea.sflag [#allocation3], %s453
        %s455 = sand.u32 %s41, 1
        %s456 = smul.addr %s455, 32
        %s457 = scalar_lea.vmem [#allocation2], %s456
        // Predicated region
        $region65: #{_lambda_.1} parent=63 // pred_check
          %p458 = pneg %p54
        $region66: #{_lambda_.1} parent=63 // pred_check_branch
          %460 = sbr.rel (%p458) target = $region68
        $region67: #{_lambda_.1} parent=63 // pred_region
          %461 = dma.done %s454, 512
        $region68: #{_lambda_.1} parent=63 // pred_fallthru
          _
        %s462 = sand.u32 %s33, 1
        %s463 = scalar_lea.sflag [#allocation6], %s462
        %s464 = sand.u32 %s67, 1
        %s465 = smul.addr %s464, 32
        %s466 = scalar_lea.vmem [#allocation5], %s465
        // Predicated region
        $region69: #{_lambda_.1} parent=63 // pred_check
          %p467 = pneg %p80
        $region70: #{_lambda_.1} parent=63 // pred_check_branch
          %469 = sbr.rel (%p467) target = $region72
        $region71: #{_lambda_.1} parent=63 // pred_region
          %470 = dma.done %s463, 512
        $region72: #{_lambda_.1} parent=63 // pred_fallthru
          _
        %s471 = sand.u32 %s33, 1
        %s472 = scalar_lea.sflag [#allocation6], %s471
        %s473 = sand.u32 %s93, 1
        %s474 = smul.addr %s473, 32
        %s475 = scalar_lea.vmem [#allocation7], %s474
        // Predicated region
        $region73: #{_lambda_.1} parent=63 // pred_check
          %p476 = pneg %p106
        $region74: #{_lambda_.1} parent=63 // pred_check_branch
          %478 = sbr.rel (%p476) target = $region76
        $region75: #{_lambda_.1} parent=63 // pred_region
          %479 = dma.done %s472, 512
        $region76: #{_lambda_.1} parent=63 // pred_fallthru
          _
        // Predicated region
        $region77: #{_lambda_.1} parent=63 // pred_check
          %p480 = pneg %p127
        $region78: #{_lambda_.1} parent=63 // pred_check_branch
          %482 = sbr.rel (%p480) target = $region80
        $region79: #{_lambda_.1} parent=63 // pred_region
          %483 = dma.done [#allocation9], 1024
        $region80: #{_lambda_.1} parent=63 // pred_fallthru
          _
        // Predicated region
        $region81: #{_lambda_.1} parent=63 // pred_check
          %p484 = pneg %p148
        $region82: #{_lambda_.1} parent=63 // pred_check_branch
          %486 = sbr.rel (%p484) target = $region84
        $region83: #{_lambda_.1} parent=63 // pred_region
          %487 = dma.done [#allocation9], 1024
        $region84: #{_lambda_.1} parent=63 // pred_fallthru
          _
        // Predicated region
        $region85: #{_lambda_.1} parent=63 // pred_check
          %p488 = pneg %p169
        $region86: #{_lambda_.1} parent=63 // pred_check_branch
          %490 = sbr.rel (%p488) target = $region88
        $region87: #{_lambda_.1} parent=63 // pred_region
          %491 = dma.done [#allocation12], 1024
        $region88: #{_lambda_.1} parent=63 // pred_fallthru
          _
        // Predicated region
        $region89: #{_lambda_.1} parent=63 // pred_check
          %p492 = pneg %p190
        $region90: #{_lambda_.1} parent=63 // pred_check_branch
          %494 = sbr.rel (%p492) target = $region92
        $region91: #{_lambda_.1} parent=63 // pred_region
          %495 = dma.done [#allocation12], 1024
        $region92: #{_lambda_.1} parent=63 // pred_fallthru
          _
        %s496 = sand.u32 %s41, 1
        %s497 = scalar_lea.sflag [#allocation3], %s496
        %s498 = sand.u32 %s41, 1
        %s499 = smul.addr %s498, 32
        %s500 = scalar_lea.vmem [#allocation2], %s499
        %p501 = pneg %p54
        %p502 = pneg %p51
        %s503 = sand.u32 %s33, 1
        %s504 = scalar_lea.sflag [#allocation6], %s503
        %s505 = sand.u32 %s67, 1
        %s506 = smul.addr %s505, 32
        %s507 = scalar_lea.vmem [#allocation5], %s506
        %p508 = pneg %p80
        %p509 = pneg %p77
        %s510 = sand.u32 %s33, 1
        %s511 = scalar_lea.sflag [#allocation6], %s510
        %s512 = sand.u32 %s93, 1
        %s513 = smul.addr %s512, 32
        %s514 = scalar_lea.vmem [#allocation7], %s513
        %p515 = pneg %p106
        %p516 = pneg %p103
        %p517 = pneg %p127
        %p518 = pneg %p124
        %p519 = pneg %p148
        %p520 = pneg %p145
        %p521 = pneg %p169
        %p522 = pneg %p166
        %p523 = pneg %p190
        %p524 = pneg %p187
        %p525 = pneg %p211
        %p526 = pneg %p208
        %p527 = pneg %p232
        %p528 = pneg %p229
        %p529 = pneg %p253
        %p530 = pneg %p250
        %p531 = pneg %p274
        %p532 = pneg %p271
        %p533 = pneg %p300
        %p534 = pneg %p297
        %s535 = sand.u32 %s287, 1
        %s536 = scalar_lea.sflag [#allocation4], %s535
        %s537 = sand.u32 %s287, 1
        %s538 = smul.addr %s537, 32
        %s539 = scalar_lea.vmem [#allocation14], %s538
        %v541 = vld [vmem:[%s457] sm:$0xff]
        %v542 = vld [vmem:[%s457 + $0x8] sm:$0xff]
        %v543 = vld [vmem:[%s457 + $0x10] sm:$0xff]
        %v544 = vld [vmem:[%s457 + $0x18] sm:$0xff]
        %v545 = vpack.c.bf16 %v542, %v541
        %v546 = vpack.c.bf16 %v544, %v543
        %v547 = vld [vmem:[%s466] sm:$0xff]
        %v548 = vld [vmem:[%s466 + $0x8] sm:$0xff]
        %v549 = vld [vmem:[%s466 + $0x10] sm:$0xff]
        %v550 = vld [vmem:[%s466 + $0x18] sm:$0xff]
        %v551 = vpack.c.bf16 %v548, %v547
        %v552 = vpack.c.bf16 %v550, %v549
        %v553 = vld [vmem:[%s475] sm:$0xff]
        %v554 = vld [vmem:[%s475 + $0x8] sm:$0xff]
        %v555 = vld [vmem:[%s475 + $0x10] sm:$0xff]
        %v556 = vld [vmem:[%s475 + $0x18] sm:$0xff]
        %v557 = vpack.c.bf16 %v554, %v553
        %v558 = vpack.c.bf16 %v556, %v555
        %v559 = vld [vmem:[#allocation8] sm:$0xf]
        %v560 = vld [vmem:[#allocation8 + $0x4] sm:$0xf]
        %v561 = vld [vmem:[#allocation8 + $0x8] sm:$0xf]
        %v562 = vld [vmem:[#allocation8 + $0xc] sm:$0xf]
        %v563 = vld [vmem:[#allocation8 + $0x10] sm:$0xf]
        %v564 = vld [vmem:[#allocation8 + $0x14] sm:$0xf]
        %v565 = vld [vmem:[#allocation8 + $0x18] sm:$0xf]
        %v566 = vld [vmem:[#allocation8 + $0x1c] sm:$0xf]
        %v567 = vld [vmem:[#allocation8 + $0x20] sm:$0xf]
        %v568 = vld [vmem:[#allocation8 + $0x24] sm:$0xf]
        %v569 = vld [vmem:[#allocation8 + $0x28] sm:$0xf]
        %v570 = vld [vmem:[#allocation8 + $0x2c] sm:$0xf]
        %v571 = vld [vmem:[#allocation8 + $0x30] sm:$0xf]
        %v572 = vld [vmem:[#allocation8 + $0x34] sm:$0xf]
        %v573 = vld [vmem:[#allocation8 + $0x38] sm:$0xf]
        %v574 = vld [vmem:[#allocation8 + $0x3c] sm:$0xf]
        %v575 = vld [vmem:[%s7] sm:$0x1]
        %v577 = vlaneseq
        %v578 = vshrl.u32 %v577, 7
        %v579 = vsub.s32 0, %v578
        %v580 = vrot.slane %v575, %v579
        %v598 = vunpack.c.l.b16 %v559
        %v599 = vunpack.c.l.b16 %v560
        %v600 = vunpack.c.l.b16 %v561
        %v601 = vunpack.c.l.b16 %v562
        %v602 = vunpack.c.l.b16 %v563
        %v603 = vunpack.c.l.b16 %v564
        %v604 = vunpack.c.l.b16 %v565
        %v605 = vunpack.c.l.b16 %v566
        %v606 = vunpack.c.l.b16 %v567
        %v607 = vunpack.c.l.b16 %v568
        %v608 = vunpack.c.l.b16 %v569
        %v609 = vunpack.c.l.b16 %v570
        %v610 = vunpack.c.l.b16 %v571
        %v611 = vunpack.c.l.b16 %v572
        %v612 = vunpack.c.l.b16 %v573
        %v613 = vunpack.c.l.b16 %v574
        %v614 = vpack.c.b16 %v599, %v598
        %v615 = vpack.c.b16 %v601, %v600
        %v616 = vpack.c.b16 %v603, %v602
        %v617 = vpack.c.b16 %v605, %v604
        %v618 = vpack.c.b16 %v607, %v606
        %v619 = vpack.c.b16 %v609, %v608
        %v620 = vpack.c.b16 %v611, %v610
        %v621 = vpack.c.b16 %v613, %v612
        %630 = vmatprep.subr.bf16.mxu0 0
        %631 = vmatpush1.bf16.msra.mxu0 %v621
        %632 = vmatprep.subr.bf16.mxu0 0
        %633 = vmatpush1.bf16.msra.mxu0 %v620
        %634 = vmatprep.subr.bf16.mxu0 0
        %635 = vmatpush1.bf16.msra.mxu0 %v619
        %636 = vmatprep.subr.bf16.mxu0 0
        %637 = vmatpush1.bf16.msra.mxu0 %v618
        %638 = vmatprep.subr.bf16.mxu0 0
        %639 = vmatpush1.bf16.msra.mxu0 %v617
        %640 = vmatprep.subr.bf16.mxu0 0
        %641 = vmatpush1.bf16.msra.mxu0 %v616
        %642 = vmatprep.subr.bf16.mxu0 0
        %643 = vmatpush1.bf16.msra.mxu0 %v615
        %644 = vmatprep.subr.bf16.mxu0 0
        %645 = vmatpush1.bf16.msra.mxu0 %v614
        %646 = vmatprep.subr.bf16.mxu0 0
        %647 = vmatpush2.bf16.msra.mxu0 0
        %648 = vmatprep.subr.bf16.mxu0 0
        %649 = vmatpush2.bf16.msra.mxu0 0
        %650 = vmatprep.subr.bf16.mxu0 0
        %651 = vmatpush2.bf16.msra.mxu0 0
        %652 = vmatprep.subr.bf16.mxu0 0
        %653 = vmatpush2.bf16.msra.mxu0 0
        %654 = vmatprep.subr.bf16.mxu0 0
        %655 = vmatpush2.bf16.msra.mxu0 0
        %656 = vmatprep.subr.bf16.mxu0 0
        %657 = vmatpush2.bf16.msra.mxu0 0
        %658 = vmatprep.subr.bf16.mxu0 0
        %659 = vmatpush2.bf16.msra.mxu0 0
        %660 = vmatprep.subr.bf16.mxu0 0
        %661 = vmatpush2.bf16.msra.mxu0 0
        %662 = vmatprep.mubr.bf16.mxu0 0
        %663 = vmatmul.mubr.bf16.gmra.mxu0 %v545
        %v664 = vpop.f32.mrf.mxu0
        %v665 = vadd.f32 %v580, %v664
        %v666 = vpop.f32.mrf.mxu0
        %v667 = vpop.f32.mrf.mxu0
        %v668 = vadd.f32 %v580, %v667
        %v669 = vpop.f32.mrf.mxu0
        %670 = vmatprep.mubr.bf16.mxu0 0
        %671 = vmatmul.mubr.bf16.gmra.mxu0 %v546
        %v672 = vpop.f32.mrf.mxu0
        %v673 = vadd.f32 %v580, %v672
        %v674 = vpop.f32.mrf.mxu0
        %v675 = vpop.f32.mrf.mxu0
        %v676 = vadd.f32 %v580, %v675
        %v677 = vpop.f32.mrf.mxu0
        %678 = vdwg.mxu0
        %v679 = vld [vmem:[#allocation10] sm:$0xf]
        %v680 = vld [vmem:[#allocation10 + $0x4] sm:$0xf]
        %v681 = vld [vmem:[#allocation10 + $0x8] sm:$0xf]
        %v682 = vld [vmem:[#allocation10 + $0xc] sm:$0xf]
        %v683 = vld [vmem:[#allocation10 + $0x10] sm:$0xf]
        %v684 = vld [vmem:[#allocation10 + $0x14] sm:$0xf]
        %v685 = vld [vmem:[#allocation10 + $0x18] sm:$0xf]
        %v686 = vld [vmem:[#allocation10 + $0x1c] sm:$0xf]
        %v687 = vld [vmem:[#allocation10 + $0x20] sm:$0xf]
        %v688 = vld [vmem:[#allocation10 + $0x24] sm:$0xf]
        %v689 = vld [vmem:[#allocation10 + $0x28] sm:$0xf]
        %v690 = vld [vmem:[#allocation10 + $0x2c] sm:$0xf]
        %v691 = vld [vmem:[#allocation10 + $0x30] sm:$0xf]
        %v692 = vld [vmem:[#allocation10 + $0x34] sm:$0xf]
        %v693 = vld [vmem:[#allocation10 + $0x38] sm:$0xf]
        %v694 = vld [vmem:[#allocation10 + $0x3c] sm:$0xf]
        %v695 = vld [vmem:[%s8] sm:$0x1]
        %v697 = vlaneseq
        %v698 = vshrl.u32 %v697, 7
        %v699 = vsub.s32 0, %v698
        %v700 = vrot.slane %v695, %v699
        %v718 = vunpack.c.l.b16 %v679
        %v719 = vunpack.c.l.b16 %v680
        %v720 = vunpack.c.l.b16 %v681
        %v721 = vunpack.c.l.b16 %v682
        %v722 = vunpack.c.l.b16 %v683
        %v723 = vunpack.c.l.b16 %v684
        %v724 = vunpack.c.l.b16 %v685
        %v725 = vunpack.c.l.b16 %v686
        %v726 = vunpack.c.l.b16 %v687
        %v727 = vunpack.c.l.b16 %v688
        %v728 = vunpack.c.l.b16 %v689
        %v729 = vunpack.c.l.b16 %v690
        %v730 = vunpack.c.l.b16 %v691
        %v731 = vunpack.c.l.b16 %v692
        %v732 = vunpack.c.l.b16 %v693
        %v733 = vunpack.c.l.b16 %v694
        %v734 = vpack.c.b16 %v719, %v718
        %v735 = vpack.c.b16 %v721, %v720
        %v736 = vpack.c.b16 %v723, %v722
        %v737 = vpack.c.b16 %v725, %v724
        %v738 = vpack.c.b16 %v727, %v726
        %v739 = vpack.c.b16 %v729, %v728
        %v740 = vpack.c.b16 %v731, %v730
        %v741 = vpack.c.b16 %v733, %v732
        %750 = vmatprep.subr.bf16.mxu0 0
        %751 = vmatpush1.bf16.msra.mxu0 %v741
        %752 = vmatprep.subr.bf16.mxu0 0
        %753 = vmatpush1.bf16.msra.mxu0 %v740
        %754 = vmatprep.subr.bf16.mxu0 0
        %755 = vmatpush1.bf16.msra.mxu0 %v739
        %756 = vmatprep.subr.bf16.mxu0 0
        %757 = vmatpush1.bf16.msra.mxu0 %v738
        %758 = vmatprep.subr.bf16.mxu0 0
        %759 = vmatpush1.bf16.msra.mxu0 %v737
        %760 = vmatprep.subr.bf16.mxu0 0
        %761 = vmatpush1.bf16.msra.mxu0 %v736
        %762 = vmatprep.subr.bf16.mxu0 0
        %763 = vmatpush1.bf16.msra.mxu0 %v735
        %764 = vmatprep.subr.bf16.mxu0 0
        %765 = vmatpush1.bf16.msra.mxu0 %v734
        %766 = vmatprep.subr.bf16.mxu0 0
        %767 = vmatpush2.bf16.msra.mxu0 0
        %768 = vmatprep.subr.bf16.mxu0 0
        %769 = vmatpush2.bf16.msra.mxu0 0
        %770 = vmatprep.subr.bf16.mxu0 0
        %771 = vmatpush2.bf16.msra.mxu0 0
        %772 = vmatprep.subr.bf16.mxu0 0
        %773 = vmatpush2.bf16.msra.mxu0 0
        %774 = vmatprep.subr.bf16.mxu0 0
        %775 = vmatpush2.bf16.msra.mxu0 0
        %776 = vmatprep.subr.bf16.mxu0 0
        %777 = vmatpush2.bf16.msra.mxu0 0
        %778 = vmatprep.subr.bf16.mxu0 0
        %779 = vmatpush2.bf16.msra.mxu0 0
        %780 = vmatprep.subr.bf16.mxu0 0
        %781 = vmatpush2.bf16.msra.mxu0 0
        %782 = vmatprep.mubr.bf16.mxu0 0
        %783 = vmatmul.mubr.bf16.gmra.mxu0 %v551
        %v784 = vpop.f32.mrf.mxu0
        %v785 = vadd.f32 %v700, %v784
        %v786 = vpop.f32.mrf.mxu0
        %v787 = vpop.f32.mrf.mxu0
        %v788 = vadd.f32 %v700, %v787
        %v789 = vpop.f32.mrf.mxu0
        %790 = vmatprep.mubr.bf16.mxu0 0
        %791 = vmatmul.mubr.bf16.gmra.mxu0 %v552
        %v792 = vpop.f32.mrf.mxu0
        %v793 = vadd.f32 %v700, %v792
        %v794 = vpop.f32.mrf.mxu0
        %v795 = vpop.f32.mrf.mxu0
        %v796 = vadd.f32 %v700, %v795
        %v797 = vpop.f32.mrf.mxu0
        %798 = vdwg.mxu0
        %v799 = vld [vmem:[#allocation11] sm:$0xf]
        %v800 = vld [vmem:[#allocation11 + $0x4] sm:$0xf]
        %v801 = vld [vmem:[#allocation11 + $0x8] sm:$0xf]
        %v802 = vld [vmem:[#allocation11 + $0xc] sm:$0xf]
        %v803 = vld [vmem:[#allocation11 + $0x10] sm:$0xf]
        %v804 = vld [vmem:[#allocation11 + $0x14] sm:$0xf]
        %v805 = vld [vmem:[#allocation11 + $0x18] sm:$0xf]
        %v806 = vld [vmem:[#allocation11 + $0x1c] sm:$0xf]
        %v807 = vld [vmem:[#allocation11 + $0x20] sm:$0xf]
        %v808 = vld [vmem:[#allocation11 + $0x24] sm:$0xf]
        %v809 = vld [vmem:[#allocation11 + $0x28] sm:$0xf]
        %v810 = vld [vmem:[#allocation11 + $0x2c] sm:$0xf]
        %v811 = vld [vmem:[#allocation11 + $0x30] sm:$0xf]
        %v812 = vld [vmem:[#allocation11 + $0x34] sm:$0xf]
        %v813 = vld [vmem:[#allocation11 + $0x38] sm:$0xf]
        %v814 = vld [vmem:[#allocation11 + $0x3c] sm:$0xf]
        %v815 = vld [vmem:[%s9] sm:$0x1]
        %v817 = vlaneseq
        %v818 = vshrl.u32 %v817, 7
        %v819 = vsub.s32 0, %v818
        %v820 = vrot.slane %v815, %v819
        %v838 = vunpack.c.l.b16 %v799
        %v839 = vunpack.c.l.b16 %v800
        %v840 = vunpack.c.l.b16 %v801
        %v841 = vunpack.c.l.b16 %v802
        %v842 = vunpack.c.l.b16 %v803
        %v843 = vunpack.c.l.b16 %v804
        %v844 = vunpack.c.l.b16 %v805
        %v845 = vunpack.c.l.b16 %v806
        %v846 = vunpack.c.l.b16 %v807
        %v847 = vunpack.c.l.b16 %v808
        %v848 = vunpack.c.l.b16 %v809
        %v849 = vunpack.c.l.b16 %v810
        %v850 = vunpack.c.l.b16 %v811
        %v851 = vunpack.c.l.b16 %v812
        %v852 = vunpack.c.l.b16 %v813
        %v853 = vunpack.c.l.b16 %v814
        %v854 = vpack.c.b16 %v839, %v838
        %v855 = vpack.c.b16 %v841, %v840
        %v856 = vpack.c.b16 %v843, %v842
        %v857 = vpack.c.b16 %v845, %v844
        %v858 = vpack.c.b16 %v847, %v846
        %v859 = vpack.c.b16 %v849, %v848
        %v860 = vpack.c.b16 %v851, %v850
        %v861 = vpack.c.b16 %v853, %v852
        %870 = vmatprep.subr.bf16.mxu0 0
        %871 = vmatpush1.bf16.msra.mxu0 %v861
        %872 = vmatprep.subr.bf16.mxu0 0
        %873 = vmatpush1.bf16.msra.mxu0 %v860
        %874 = vmatprep.subr.bf16.mxu0 0
        %875 = vmatpush1.bf16.msra.mxu0 %v859
        %876 = vmatprep.subr.bf16.mxu0 0
        %877 = vmatpush1.bf16.msra.mxu0 %v858
        %878 = vmatprep.subr.bf16.mxu0 0
        %879 = vmatpush1.bf16.msra.mxu0 %v857
        %880 = vmatprep.subr.bf16.mxu0 0
        %881 = vmatpush1.bf16.msra.mxu0 %v856
        %882 = vmatprep.subr.bf16.mxu0 0
        %883 = vmatpush1.bf16.msra.mxu0 %v855
        %884 = vmatprep.subr.bf16.mxu0 0
        %885 = vmatpush1.bf16.msra.mxu0 %v854
        %886 = vmatprep.subr.bf16.mxu0 0
        %887 = vmatpush2.bf16.msra.mxu0 0
        %888 = vmatprep.subr.bf16.mxu0 0
        %889 = vmatpush2.bf16.msra.mxu0 0
        %890 = vmatprep.subr.bf16.mxu0 0
        %891 = vmatpush2.bf16.msra.mxu0 0
        %892 = vmatprep.subr.bf16.mxu0 0
        %893 = vmatpush2.bf16.msra.mxu0 0
        %894 = vmatprep.subr.bf16.mxu0 0
        %895 = vmatpush2.bf16.msra.mxu0 0
        %896 = vmatprep.subr.bf16.mxu0 0
        %897 = vmatpush2.bf16.msra.mxu0 0
        %898 = vmatprep.subr.bf16.mxu0 0
        %899 = vmatpush2.bf16.msra.mxu0 0
        %900 = vmatprep.subr.bf16.mxu0 0
        %901 = vmatpush2.bf16.msra.mxu0 0
        %902 = vmatprep.mubr.bf16.mxu0 0
        %903 = vmatmul.mubr.bf16.gmra.mxu0 %v557
        %v904 = vpop.f32.mrf.mxu0
        %v905 = vadd.f32 %v820, %v904
        %v906 = vpop.f32.mrf.mxu0
        %v907 = vpop.f32.mrf.mxu0
        %v908 = vadd.f32 %v820, %v907
        %v909 = vpop.f32.mrf.mxu0
        %910 = vmatprep.mubr.bf16.mxu0 0
        %911 = vmatmul.mubr.bf16.gmra.mxu0 %v558
        %v912 = vpop.f32.mrf.mxu0
        %v913 = vadd.f32 %v820, %v912
        %v914 = vpop.f32.mrf.mxu0
        %v915 = vpop.f32.mrf.mxu0
        %v916 = vadd.f32 %v820, %v915
        %v917 = vpop.f32.mrf.mxu0
        %918 = vdwg.mxu0
        %v919 = vmul.f32 %v665, 0.17677669
        %v920 = vmul.f32 %v668, 0.17677669
        %v921 = vmul.f32 %v673, 0.17677669
        %v922 = vmul.f32 %v676, 0.17677669
        %v923 = vpack.c.bf16 %v920, %v919
        %v924 = vpack.c.bf16 %v922, %v921
        %v925 = vpack.c.bf16 %v788, %v785
        %v926 = vpack.c.bf16 %v796, %v793
        %v927 = vpack.c.bf16 %v908, %v905
        %v928 = vpack.c.bf16 %v916, %v913
        %vm929 = vcmask 261120
        %v931 = vsel %vm929, %v923, 0
        %v934 = vsel %vm929, %v924, 0
        %v937 = vsel %vm929, %v925, 0
        %v940 = vsel %vm929, %v926, 0
        %942 = vmatprep.subr.bf16.mxu0 0
        %943 = vmatpush1.bf16.xpose.msra.mxu0 0
        %944 = vmatprep.subr.bf16.mxu0 0
        %945 = vmatpush1.bf16.xpose.msra.mxu0 0
        %946 = vmatprep.subr.bf16.mxu0 0
        %947 = vmatpush1.bf16.xpose.msra.mxu0 0
        %948 = vmatprep.subr.bf16.mxu0 0
        %949 = vmatpush1.bf16.xpose.msra.mxu0 0
        %950 = vmatprep.subr.bf16.mxu0 0
        %951 = vmatpush1.bf16.xpose.msra.mxu0 0
        %952 = vmatprep.subr.bf16.mxu0 0
        %953 = vmatpush1.bf16.xpose.msra.mxu0 0
        %954 = vmatprep.subr.bf16.mxu0 0
        %955 = vmatpush1.bf16.xpose.msra.mxu0 %v940
        %956 = vmatprep.subr.bf16.mxu0 0
        %957 = vmatpush1.bf16.xpose.msra.mxu0 %v937
        %958 = vmatprep.subr.bf16.mxu0 0
        %959 = vmatpush2.bf16.xpose.msra.mxu0 0
        %960 = vmatprep.subr.bf16.mxu0 0
        %961 = vmatpush2.bf16.xpose.msra.mxu0 0
        %962 = vmatprep.subr.bf16.mxu0 0
        %963 = vmatpush2.bf16.xpose.msra.mxu0 0
        %964 = vmatprep.subr.bf16.mxu0 0
        %965 = vmatpush2.bf16.xpose.msra.mxu0 0
        %966 = vmatprep.subr.bf16.mxu0 0
        %967 = vmatpush2.bf16.xpose.msra.mxu0 0
        %968 = vmatprep.subr.bf16.mxu0 0
        %969 = vmatpush2.bf16.xpose.msra.mxu0 0
        %970 = vmatprep.subr.bf16.mxu0 0
        %971 = vmatpush2.bf16.xpose.msra.mxu0 0
        %972 = vmatprep.subr.bf16.mxu0 0
        %973 = vmatpush2.bf16.xpose.msra.mxu0 0
        %974 = vmatprep.mubr.bf16.mxu0 0
        %975 = vmatmul.mubr.bf16.gmra.mxu0 %v931
        %v976 = vpop.f32.mrf.mxu0
        %v977 = vadd.f32 0.0, %v976
        %v978 = vpop.f32.mrf.mxu0
        %v979 = vpop.f32.mrf.mxu0
        %v980 = vadd.f32 0.0, %v979
        %v981 = vpop.f32.mrf.mxu0
        %982 = vmatprep.mubr.bf16.mxu0 0
        %983 = vmatmul.mubr.bf16.gmra.mxu0 %v934
        %v984 = vpop.f32.mrf.mxu0
        %v985 = vadd.f32 0.0, %v984
        %v986 = vpop.f32.mrf.mxu0
        %v987 = vpop.f32.mrf.mxu0
        %v988 = vadd.f32 0.0, %v987
        %v989 = vpop.f32.mrf.mxu0
        %990 = vdwg.mxu0
        %v991 = vsel %vm929, %v977, -inf
        %992 = vmax.xlane.f32.xlu0 %v991
        %v993 = vpop.xlane.xlu0 %992
        %v994 = vsel %vm929, %v980, -inf
        %995 = vmax.xlane.f32.xlu0 %v994
        %v996 = vpop.xlane.xlu0 %995
        %v997 = vsel %vm929, %v985, -inf
        %998 = vmax.xlane.f32.xlu0 %v997
        %v999 = vpop.xlane.xlu0 %998
        %v1000 = vsel %vm929, %v988, -inf
        %1001 = vmax.xlane.f32.xlu0 %v1000
        %v1002 = vpop.xlane.xlu0 %1001
        %v1003 = vsub.f32 %v977, %v993
        %v1004 = vsub.f32 %v980, %v996
        %v1005 = vsub.f32 %v985, %v999
        %v1006 = vsub.f32 %v988, %v1002
        %v1007 = vmul.f32 %v1003, 1.442695
        %v1008 = vpow.pop %v1007
        %v1009 = vmul.f32 %v1004, 1.442695
        %v1010 = vpow.pop %v1009
        %v1011 = vmul.f32 %v1005, 1.442695
        %v1012 = vpow.pop %v1011
        %v1013 = vmul.f32 %v1006, 1.442695
        %v1014 = vpow.pop %v1013
        %v1015 = vsel %vm929, %v1008, 0.0
        %1016 = vadd.xlane.f32.xlu0 %v1015
        %v1017 = vpop.xlane.xlu0 %1016
        %v1018 = vsel %vm929, %v1010, 0.0
        %1019 = vadd.xlane.f32.xlu0 %v1018
        %v1020 = vpop.xlane.xlu0 %1019
        %v1021 = vsel %vm929, %v1012, 0.0
        %1022 = vadd.xlane.f32.xlu0 %v1021
        %v1023 = vpop.xlane.xlu0 %1022
        %v1024 = vsel %vm929, %v1014, 0.0
        %1025 = vadd.xlane.f32.xlu0 %v1024
        %v1026 = vpop.xlane.xlu0 %1025
        %v1027 = vrcp.pop %v1017
        %v1028 = vrcp.pop %v1020
        %v1029 = vrcp.pop %v1023
        %v1030 = vrcp.pop %v1026
        %v1031 = vmul.f32 %v1008, %v1027
        %v1032 = vmul.f32 %v1010, %v1028
        %v1033 = vmul.f32 %v1012, %v1029
        %v1034 = vmul.f32 %v1014, %v1030
        %v1035 = vpack.c.bf16 %v1032, %v1031
        %v1036 = vpack.c.bf16 %v1034, %v1033
        %v1038 = vsel %vm929, %v1035, 0
        %v1041 = vsel %vm929, %v1036, 0
        %1043 = vmatprep.subr.bf16.mxu0 0
        %1044 = vmatpush1.bf16.msra.mxu0 0
        %1045 = vmatprep.subr.bf16.mxu0 0
        %1046 = vmatpush1.bf16.msra.mxu0 0
        %1047 = vmatprep.subr.bf16.mxu0 0
        %1048 = vmatpush1.bf16.msra.mxu0 0
        %1049 = vmatprep.subr.bf16.mxu0 0
        %1050 = vmatpush1.bf16.msra.mxu0 0
        %1051 = vmatprep.subr.bf16.mxu0 0
        %1052 = vmatpush1.bf16.msra.mxu0 0
        %1053 = vmatprep.subr.bf16.mxu0 0
        %1054 = vmatpush1.bf16.msra.mxu0 0
        %1055 = vmatprep.subr.bf16.mxu0 0
        %1056 = vmatpush1.bf16.msra.mxu0 %v928
        %1057 = vmatprep.subr.bf16.mxu0 0
        %1058 = vmatpush1.bf16.msra.mxu0 %v927
        %1059 = vmatprep.subr.bf16.mxu0 0
        %1060 = vmatpush2.bf16.msra.mxu0 0
        %1061 = vmatprep.subr.bf16.mxu0 0
        %1062 = vmatpush2.bf16.msra.mxu0 0
        %1063 = vmatprep.subr.bf16.mxu0 0
        %1064 = vmatpush2.bf16.msra.mxu0 0
        %1065 = vmatprep.subr.bf16.mxu0 0
        %1066 = vmatpush2.bf16.msra.mxu0 0
        %1067 = vmatprep.subr.bf16.mxu0 0
        %1068 = vmatpush2.bf16.msra.mxu0 0
        %1069 = vmatprep.subr.bf16.mxu0 0
        %1070 = vmatpush2.bf16.msra.mxu0 0
        %1071 = vmatprep.subr.bf16.mxu0 0
        %1072 = vmatpush2.bf16.msra.mxu0 0
        %1073 = vmatprep.subr.bf16.mxu0 0
        %1074 = vmatpush2.bf16.msra.mxu0 0
        %1075 = vmatprep.mubr.bf16.mxu0 0
        %1076 = vmatmul.mubr.bf16.gmra.mxu0 %v1038
        %v1077 = vpop.f32.mrf.mxu0
        %v1078 = vadd.f32 0.0, %v1077
        %v1079 = vpop.f32.mrf.mxu0
        %v1080 = vpop.f32.mrf.mxu0
        %v1081 = vadd.f32 0.0, %v1080
        %v1082 = vpop.f32.mrf.mxu0
        %1083 = vmatprep.mubr.bf16.mxu0 0
        %1084 = vmatmul.mubr.bf16.gmra.mxu0 %v1041
        %v1085 = vpop.f32.mrf.mxu0
        %v1086 = vadd.f32 0.0, %v1085
        %v1087 = vpop.f32.mrf.mxu0
        %v1088 = vpop.f32.mrf.mxu0
        %v1089 = vadd.f32 0.0, %v1088
        %v1090 = vpop.f32.mrf.mxu0
        %1091 = vdwg.mxu0
        %1094 = vrot.lane.b32.xlu0 %v923, 96
        %v1095 = vpop.permute.xlu0 %1094
        %1096 = vrot.lane.b32.xlu0 %v924, 96
        %v1097 = vpop.permute.xlu0 %1096
        %1100 = vrot.lane.b32.xlu0 %v925, 96
        %v1101 = vpop.permute.xlu0 %1100
        %1102 = vrot.lane.b32.xlu0 %v926, 96
        %v1103 = vpop.permute.xlu0 %1102
        %v1105 = vsel %vm929, %v1095, 0
        %v1108 = vsel %vm929, %v1097, 0
        %v1111 = vsel %vm929, %v1101, 0
        %v1114 = vsel %vm929, %v1103, 0
        %1116 = vmatprep.subr.bf16.mxu0 0
        %1117 = vmatpush1.bf16.xpose.msra.mxu0 0
        %1118 = vmatprep.subr.bf16.mxu0 0
        %1119 = vmatpush1.bf16.xpose.msra.mxu0 0
        %1120 = vmatprep.subr.bf16.mxu0 0
        %1121 = vmatpush1.bf16.xpose.msra.mxu0 0
        %1122 = vmatprep.subr.bf16.mxu0 0
        %1123 = vmatpush1.bf16.xpose.msra.mxu0 0
        %1124 = vmatprep.subr.bf16.mxu0 0
        %1125 = vmatpush1.bf16.xpose.msra.mxu0 0
        %1126 = vmatprep.subr.bf16.mxu0 0
        %1127 = vmatpush1.bf16.xpose.msra.mxu0 0
        %1128 = vmatprep.subr.bf16.mxu0 0
        %1129 = vmatpush1.bf16.xpose.msra.mxu0 %v1114
        %1130 = vmatprep.subr.bf16.mxu0 0
        %1131 = vmatpush1.bf16.xpose.msra.mxu0 %v1111
        %1132 = vmatprep.subr.bf16.mxu0 0
        %1133 = vmatpush2.bf16.xpose.msra.mxu0 0
        %1134 = vmatprep.subr.bf16.mxu0 0
        %1135 = vmatpush2.bf16.xpose.msra.mxu0 0
        %1136 = vmatprep.subr.bf16.mxu0 0
        %1137 = vmatpush2.bf16.xpose.msra.mxu0 0
        %1138 = vmatprep.subr.bf16.mxu0 0
        %1139 = vmatpush2.bf16.xpose.msra.mxu0 0
        %1140 = vmatprep.subr.bf16.mxu0 0
        %1141 = vmatpush2.bf16.xpose.msra.mxu0 0
        %1142 = vmatprep.subr.bf16.mxu0 0
        %1143 = vmatpush2.bf16.xpose.msra.mxu0 0
        %1144 = vmatprep.subr.bf16.mxu0 0
        %1145 = vmatpush2.bf16.xpose.msra.mxu0 0
        %1146 = vmatprep.subr.bf16.mxu0 0
        %1147 = vmatpush2.bf16.xpose.msra.mxu0 0
        %1148 = vmatprep.mubr.bf16.mxu0 0
        %1149 = vmatmul.mubr.bf16.gmra.mxu0 %v1105
        %v1150 = vpop.f32.mrf.mxu0
        %v1151 = vadd.f32 0.0, %v1150
        %v1152 = vpop.f32.mrf.mxu0
        %v1153 = vpop.f32.mrf.mxu0
        %v1154 = vadd.f32 0.0, %v1153
        %v1155 = vpop.f32.mrf.mxu0
        %1156 = vmatprep.mubr.bf16.mxu0 0
        %1157 = vmatmul.mubr.bf16.gmra.mxu0 %v1108
        %v1158 = vpop.f32.mrf.mxu0
        %v1159 = vadd.f32 0.0, %v1158
        %v1160 = vpop.f32.mrf.mxu0
        %v1161 = vpop.f32.mrf.mxu0
        %v1162 = vadd.f32 0.0, %v1161
        %v1163 = vpop.f32.mrf.mxu0
        %1164 = vdwg.mxu0
        %v1165 = vsel %vm929, %v1151, -inf
        %1166 = vmax.xlane.f32.xlu0 %v1165
        %v1167 = vpop.xlane.xlu0 %1166
        %v1168 = vsel %vm929, %v1154, -inf
        %1169 = vmax.xlane.f32.xlu0 %v1168
        %v1170 = vpop.xlane.xlu0 %1169
        %v1171 = vsel %vm929, %v1159, -inf
        %1172 = vmax.xlane.f32.xlu0 %v1171
        %v1173 = vpop.xlane.xlu0 %1172
        %v1174 = vsel %vm929, %v1162, -inf
        %1175 = vmax.xlane.f32.xlu0 %v1174
        %v1176 = vpop.xlane.xlu0 %1175
        %v1177 = vsub.f32 %v1151, %v1167
        %v1178 = vsub.f32 %v1154, %v1170
        %v1179 = vsub.f32 %v1159, %v1173
        %v1180 = vsub.f32 %v1162, %v1176
        %v1181 = vmul.f32 %v1177, 1.442695
        %v1182 = vpow.pop %v1181
        %v1183 = vmul.f32 %v1178, 1.442695
        %v1184 = vpow.pop %v1183
        %v1185 = vmul.f32 %v1179, 1.442695
        %v1186 = vpow.pop %v1185
        %v1187 = vmul.f32 %v1180, 1.442695
        %v1188 = vpow.pop %v1187
        %v1189 = vsel %vm929, %v1182, 0.0
        %1190 = vadd.xlane.f32.xlu0 %v1189
        %v1191 = vpop.xlane.xlu0 %1190
        %v1192 = vsel %vm929, %v1184, 0.0
        %1193 = vadd.xlane.f32.xlu0 %v1192
        %v1194 = vpop.xlane.xlu0 %1193
        %v1195 = vsel %vm929, %v1186, 0.0
        %1196 = vadd.xlane.f32.xlu0 %v1195
        %v1197 = vpop.xlane.xlu0 %1196
        %v1198 = vsel %vm929, %v1188, 0.0
        %1199 = vadd.xlane.f32.xlu0 %v1198
        %v1200 = vpop.xlane.xlu0 %1199
        %v1201 = vrcp.pop %v1191
        %v1202 = vrcp.pop %v1194
        %v1203 = vrcp.pop %v1197
        %v1204 = vrcp.pop %v1200
        %v1205 = vmul.f32 %v1182, %v1201
        %v1206 = vmul.f32 %v1184, %v1202
        %v1207 = vmul.f32 %v1186, %v1203
        %v1208 = vmul.f32 %v1188, %v1204
        %v1209 = vpack.c.bf16 %v1206, %v1205
        %v1210 = vpack.c.bf16 %v1208, %v1207
        %1213 = vrot.lane.b32.xlu0 %v927, 96
        %v1214 = vpop.permute.xlu0 %1213
        %1215 = vrot.lane.b32.xlu0 %v928, 96
        %v1216 = vpop.permute.xlu0 %1215
        %v1220 = vsel %vm929, %v1209, 0
        %v1223 = vsel %vm929, %v1210, 0
        %1225 = vmatprep.subr.bf16.mxu0 0
        %1226 = vmatpush1.bf16.msra.mxu0 0
        %1227 = vmatprep.subr.bf16.mxu0 0
        %1228 = vmatpush1.bf16.msra.mxu0 0
        %1229 = vmatprep.subr.bf16.mxu0 0
        %1230 = vmatpush1.bf16.msra.mxu0 0
        %1231 = vmatprep.subr.bf16.mxu0 0
        %1232 = vmatpush1.bf16.msra.mxu0 0
        %1233 = vmatprep.subr.bf16.mxu0 0
        %1234 = vmatpush1.bf16.msra.mxu0 0
        %1235 = vmatprep.subr.bf16.mxu0 0
        %1236 = vmatpush1.bf16.msra.mxu0 0
        %1237 = vmatprep.subr.bf16.mxu0 0
        %1238 = vmatpush1.bf16.msra.mxu0 %v1216
        %1239 = vmatprep.subr.bf16.mxu0 0
        %1240 = vmatpush1.bf16.msra.mxu0 %v1214
        %1241 = vmatprep.subr.bf16.mxu0 0
        %1242 = vmatpush2.bf16.msra.mxu0 0
        %1243 = vmatprep.subr.bf16.mxu0 0
        %1244 = vmatpush2.bf16.msra.mxu0 0
        %1245 = vmatprep.subr.bf16.mxu0 0
        %1246 = vmatpush2.bf16.msra.mxu0 0
        %1247 = vmatprep.subr.bf16.mxu0 0
        %1248 = vmatpush2.bf16.msra.mxu0 0
        %1249 = vmatprep.subr.bf16.mxu0 0
        %1250 = vmatpush2.bf16.msra.mxu0 0
        %1251 = vmatprep.subr.bf16.mxu0 0
        %1252 = vmatpush2.bf16.msra.mxu0 0
        %1253 = vmatprep.subr.bf16.mxu0 0
        %1254 = vmatpush2.bf16.msra.mxu0 0
        %1255 = vmatprep.subr.bf16.mxu0 0
        %1256 = vmatpush2.bf16.msra.mxu0 0
        %1257 = vmatprep.mubr.bf16.mxu0 0
        %1258 = vmatmul.mubr.bf16.gmra.mxu0 %v1220
        %v1259 = vpop.f32.mrf.mxu0
        %v1260 = vadd.f32 0.0, %v1259
        %v1261 = vpop.f32.mrf.mxu0
        %v1262 = vpop.f32.mrf.mxu0
        %v1263 = vadd.f32 0.0, %v1262
        %v1264 = vpop.f32.mrf.mxu0
        %1265 = vmatprep.mubr.bf16.mxu0 0
        %1266 = vmatmul.mubr.bf16.gmra.mxu0 %v1223
        %v1267 = vpop.f32.mrf.mxu0
        %v1268 = vadd.f32 0.0, %v1267
        %v1269 = vpop.f32.mrf.mxu0
        %v1270 = vpop.f32.mrf.mxu0
        %v1271 = vadd.f32 0.0, %v1270
        %v1272 = vpop.f32.mrf.mxu0
        %1273 = vdwg.mxu0
        %1274 = vrot.lane.b32.xlu0 %v923, 64
        %v1275 = vpop.permute.xlu0 %1274
        %1276 = vrot.lane.b32.xlu0 %v924, 64
        %v1277 = vpop.permute.xlu0 %1276
        %1278 = vrot.lane.b32.xlu0 %v925, 64
        %v1279 = vpop.permute.xlu0 %1278
        %1280 = vrot.lane.b32.xlu0 %v926, 64
        %v1281 = vpop.permute.xlu0 %1280
        %v1283 = vsel %vm929, %v1275, 0
        %v1286 = vsel %vm929, %v1277, 0
        %v1289 = vsel %vm929, %v1279, 0
        %v1292 = vsel %vm929, %v1281, 0
        %1294 = vmatprep.subr.bf16.mxu0 0
        %1295 = vmatpush1.bf16.xpose.msra.mxu0 0
        %1296 = vmatprep.subr.bf16.mxu0 0
        %1297 = vmatpush1.bf16.xpose.msra.mxu0 0
        %1298 = vmatprep.subr.bf16.mxu0 0
        %1299 = vmatpush1.bf16.xpose.msra.mxu0 0
        %1300 = vmatprep.subr.bf16.mxu0 0
        %1301 = vmatpush1.bf16.xpose.msra.mxu0 0
        %1302 = vmatprep.subr.bf16.mxu0 0
        %1303 = vmatpush1.bf16.xpose.msra.mxu0 0
        %1304 = vmatprep.subr.bf16.mxu0 0
        %1305 = vmatpush1.bf16.xpose.msra.mxu0 0
        %1306 = vmatprep.subr.bf16.mxu0 0
        %1307 = vmatpush1.bf16.xpose.msra.mxu0 %v1292
        %1308 = vmatprep.subr.bf16.mxu0 0
        %1309 = vmatpush1.bf16.xpose.msra.mxu0 %v1289
        %1310 = vmatprep.subr.bf16.mxu0 0
        %1311 = vmatpush2.bf16.xpose.msra.mxu0 0
        %1312 = vmatprep.subr.bf16.mxu0 0
        %1313 = vmatpush2.bf16.xpose.msra.mxu0 0
        %1314 = vmatprep.subr.bf16.mxu0 0
        %1315 = vmatpush2.bf16.xpose.msra.mxu0 0
        %1316 = vmatprep.subr.bf16.mxu0 0
        %1317 = vmatpush2.bf16.xpose.msra.mxu0 0
        %1318 = vmatprep.subr.bf16.mxu0 0
        %1319 = vmatpush2.bf16.xpose.msra.mxu0 0
        %1320 = vmatprep.subr.bf16.mxu0 0
        %1321 = vmatpush2.bf16.xpose.msra.mxu0 0
        %1322 = vmatprep.subr.bf16.mxu0 0
        %1323 = vmatpush2.bf16.xpose.msra.mxu0 0
        %1324 = vmatprep.subr.bf16.mxu0 0
        %1325 = vmatpush2.bf16.xpose.msra.mxu0 0
        %1326 = vmatprep.mubr.bf16.mxu0 0
        %1327 = vmatmul.mubr.bf16.gmra.mxu0 %v1283
        %v1328 = vpop.f32.mrf.mxu0
        %v1329 = vadd.f32 0.0, %v1328
        %v1330 = vpop.f32.mrf.mxu0
        %v1331 = vpop.f32.mrf.mxu0
        %v1332 = vadd.f32 0.0, %v1331
        %v1333 = vpop.f32.mrf.mxu0
        %1334 = vmatprep.mubr.bf16.mxu0 0
        %1335 = vmatmul.mubr.bf16.gmra.mxu0 %v1286
        %v1336 = vpop.f32.mrf.mxu0
        %v1337 = vadd.f32 0.0, %v1336
        %v1338 = vpop.f32.mrf.mxu0
        %v1339 = vpop.f32.mrf.mxu0
        %v1340 = vadd.f32 0.0, %v1339
        %v1341 = vpop.f32.mrf.mxu0
        %1342 = vdwg.mxu0
        %v1343 = vsel %vm929, %v1329, -inf
        %1344 = vmax.xlane.f32.xlu0 %v1343
        %v1345 = vpop.xlane.xlu0 %1344
        %v1346 = vsel %vm929, %v1332, -inf
        %1347 = vmax.xlane.f32.xlu0 %v1346
        %v1348 = vpop.xlane.xlu0 %1347
        %v1349 = vsel %vm929, %v1337, -inf
        %1350 = vmax.xlane.f32.xlu0 %v1349
        %v1351 = vpop.xlane.xlu0 %1350
        %v1352 = vsel %vm929, %v1340, -inf
        %1353 = vmax.xlane.f32.xlu0 %v1352
        %v1354 = vpop.xlane.xlu0 %1353
        %v1355 = vsub.f32 %v1329, %v1345
        %v1356 = vsub.f32 %v1332, %v1348
        %v1357 = vsub.f32 %v1337, %v1351
        %v1358 = vsub.f32 %v1340, %v1354
        %v1359 = vmul.f32 %v1355, 1.442695
        %v1360 = vpow.pop %v1359
        %v1361 = vmul.f32 %v1356, 1.442695
        %v1362 = vpow.pop %v1361
        %v1363 = vmul.f32 %v1357, 1.442695
        %v1364 = vpow.pop %v1363
        %v1365 = vmul.f32 %v1358, 1.442695
        %v1366 = vpow.pop %v1365
        %v1367 = vsel %vm929, %v1360, 0.0
        %1368 = vadd.xlane.f32.xlu0 %v1367
        %v1369 = vpop.xlane.xlu0 %1368
        %v1370 = vsel %vm929, %v1362, 0.0
        %1371 = vadd.xlane.f32.xlu0 %v1370
        %v1372 = vpop.xlane.xlu0 %1371
        %v1373 = vsel %vm929, %v1364, 0.0
        %1374 = vadd.xlane.f32.xlu0 %v1373
        %v1375 = vpop.xlane.xlu0 %1374
        %v1376 = vsel %vm929, %v1366, 0.0
        %1377 = vadd.xlane.f32.xlu0 %v1376
        %v1378 = vpop.xlane.xlu0 %1377
        %v1379 = vrcp.pop %v1369
        %v1380 = vrcp.pop %v1372
        %v1381 = vrcp.pop %v1375
        %v1382 = vrcp.pop %v1378
        %v1383 = vmul.f32 %v1360, %v1379
        %v1384 = vmul.f32 %v1362, %v1380
        %v1385 = vmul.f32 %v1364, %v1381
        %v1386 = vmul.f32 %v1366, %v1382
        %v1387 = vpack.c.bf16 %v1384, %v1383
        %v1388 = vpack.c.bf16 %v1386, %v1385
        %1389 = vrot.lane.b32.xlu0 %v927, 64
        %v1390 = vpop.permute.xlu0 %1389
        %1391 = vrot.lane.b32.xlu0 %v928, 64
        %v1392 = vpop.permute.xlu0 %1391
        %v1396 = vsel %vm929, %v1387, 0
        %v1399 = vsel %vm929, %v1388, 0
        %1401 = vmatprep.subr.bf16.mxu0 0
        %1402 = vmatpush1.bf16.msra.mxu0 0
        %1403 = vmatprep.subr.bf16.mxu0 0
        %1404 = vmatpush1.bf16.msra.mxu0 0
        %1405 = vmatprep.subr.bf16.mxu0 0
        %1406 = vmatpush1.bf16.msra.mxu0 0
        %1407 = vmatprep.subr.bf16.mxu0 0
        %1408 = vmatpush1.bf16.msra.mxu0 0
        %1409 = vmatprep.subr.bf16.mxu0 0
        %1410 = vmatpush1.bf16.msra.mxu0 0
        %1411 = vmatprep.subr.bf16.mxu0 0
        %1412 = vmatpush1.bf16.msra.mxu0 0
        %1413 = vmatprep.subr.bf16.mxu0 0
        %1414 = vmatpush1.bf16.msra.mxu0 %v1392
        %1415 = vmatprep.subr.bf16.mxu0 0
        %1416 = vmatpush1.bf16.msra.mxu0 %v1390
        %1417 = vmatprep.subr.bf16.mxu0 0
        %1418 = vmatpush2.bf16.msra.mxu0 0
        %1419 = vmatprep.subr.bf16.mxu0 0
        %1420 = vmatpush2.bf16.msra.mxu0 0
        %1421 = vmatprep.subr.bf16.mxu0 0
        %1422 = vmatpush2.bf16.msra.mxu0 0
        %1423 = vmatprep.subr.bf16.mxu0 0
        %1424 = vmatpush2.bf16.msra.mxu0 0
        %1425 = vmatprep.subr.bf16.mxu0 0
        %1426 = vmatpush2.bf16.msra.mxu0 0
        %1427 = vmatprep.subr.bf16.mxu0 0
        %1428 = vmatpush2.bf16.msra.mxu0 0
        %1429 = vmatprep.subr.bf16.mxu0 0
        %1430 = vmatpush2.bf16.msra.mxu0 0
        %1431 = vmatprep.subr.bf16.mxu0 0
        %1432 = vmatpush2.bf16.msra.mxu0 0
        %1433 = vmatprep.mubr.bf16.mxu0 0
        %1434 = vmatmul.mubr.bf16.gmra.mxu0 %v1396
        %v1435 = vpop.f32.mrf.mxu0
        %v1436 = vadd.f32 0.0, %v1435
        %v1437 = vpop.f32.mrf.mxu0
        %v1438 = vpop.f32.mrf.mxu0
        %v1439 = vadd.f32 0.0, %v1438
        %v1440 = vpop.f32.mrf.mxu0
        %1441 = vmatprep.mubr.bf16.mxu0 0
        %1442 = vmatmul.mubr.bf16.gmra.mxu0 %v1399
        %v1443 = vpop.f32.mrf.mxu0
        %v1444 = vadd.f32 0.0, %v1443
        %v1445 = vpop.f32.mrf.mxu0
        %v1446 = vpop.f32.mrf.mxu0
        %v1447 = vadd.f32 0.0, %v1446
        %v1448 = vpop.f32.mrf.mxu0
        %1449 = vdwg.mxu0
        %1450 = vrot.lane.b32.xlu0 %v923, 32
        %v1451 = vpop.permute.xlu0 %1450
        %1452 = vrot.lane.b32.xlu0 %v924, 32
        %v1453 = vpop.permute.xlu0 %1452
        %1454 = vrot.lane.b32.xlu0 %v925, 32
        %v1455 = vpop.permute.xlu0 %1454
        %1456 = vrot.lane.b32.xlu0 %v926, 32
        %v1457 = vpop.permute.xlu0 %1456
        %v1459 = vsel %vm929, %v1451, 0
        %v1462 = vsel %vm929, %v1453, 0
        %v1465 = vsel %vm929, %v1455, 0
        %v1468 = vsel %vm929, %v1457, 0
        %1470 = vmatprep.subr.bf16.mxu0 0
        %1471 = vmatpush1.bf16.xpose.msra.mxu0 0
        %1472 = vmatprep.subr.bf16.mxu0 0
        %1473 = vmatpush1.bf16.xpose.msra.mxu0 0
        %1474 = vmatprep.subr.bf16.mxu0 0
        %1475 = vmatpush1.bf16.xpose.msra.mxu0 0
        %1476 = vmatprep.subr.bf16.mxu0 0
        %1477 = vmatpush1.bf16.xpose.msra.mxu0 0
        %1478 = vmatprep.subr.bf16.mxu0 0
        %1479 = vmatpush1.bf16.xpose.msra.mxu0 0
        %1480 = vmatprep.subr.bf16.mxu0 0
        %1481 = vmatpush1.bf16.xpose.msra.mxu0 0
        %1482 = vmatprep.subr.bf16.mxu0 0
        %1483 = vmatpush1.bf16.xpose.msra.mxu0 %v1468
        %1484 = vmatprep.subr.bf16.mxu0 0
        %1485 = vmatpush1.bf16.xpose.msra.mxu0 %v1465
        %1486 = vmatprep.subr.bf16.mxu0 0
        %1487 = vmatpush2.bf16.xpose.msra.mxu0 0
        %1488 = vmatprep.subr.bf16.mxu0 0
        %1489 = vmatpush2.bf16.xpose.msra.mxu0 0
        %1490 = vmatprep.subr.bf16.mxu0 0
        %1491 = vmatpush2.bf16.xpose.msra.mxu0 0
        %1492 = vmatprep.subr.bf16.mxu0 0
        %1493 = vmatpush2.bf16.xpose.msra.mxu0 0
        %1494 = vmatprep.subr.bf16.mxu0 0
        %1495 = vmatpush2.bf16.xpose.msra.mxu0 0
        %1496 = vmatprep.subr.bf16.mxu0 0
        %1497 = vmatpush2.bf16.xpose.msra.mxu0 0
        %1498 = vmatprep.subr.bf16.mxu0 0
        %1499 = vmatpush2.bf16.xpose.msra.mxu0 0
        %1500 = vmatprep.subr.bf16.mxu0 0
        %1501 = vmatpush2.bf16.xpose.msra.mxu0 0
        %1502 = vmatprep.mubr.bf16.mxu0 0
        %1503 = vmatmul.mubr.bf16.gmra.mxu0 %v1459
        %v1504 = vpop.f32.mrf.mxu0
        %v1505 = vadd.f32 0.0, %v1504
        %v1506 = vpop.f32.mrf.mxu0
        %v1507 = vpop.f32.mrf.mxu0
        %v1508 = vadd.f32 0.0, %v1507
        %v1509 = vpop.f32.mrf.mxu0
        %1510 = vmatprep.mubr.bf16.mxu0 0
        %1511 = vmatmul.mubr.bf16.gmra.mxu0 %v1462
        %v1512 = vpop.f32.mrf.mxu0
        %v1513 = vadd.f32 0.0, %v1512
        %v1514 = vpop.f32.mrf.mxu0
        %v1515 = vpop.f32.mrf.mxu0
        %v1516 = vadd.f32 0.0, %v1515
        %v1517 = vpop.f32.mrf.mxu0
        %1518 = vdwg.mxu0
        %v1519 = vsel %vm929, %v1505, -inf
        %1520 = vmax.xlane.f32.xlu0 %v1519
        %v1521 = vpop.xlane.xlu0 %1520
        %v1522 = vsel %vm929, %v1508, -inf
        %1523 = vmax.xlane.f32.xlu0 %v1522
        %v1524 = vpop.xlane.xlu0 %1523
        %v1525 = vsel %vm929, %v1513, -inf
        %1526 = vmax.xlane.f32.xlu0 %v1525
        %v1527 = vpop.xlane.xlu0 %1526
        %v1528 = vsel %vm929, %v1516, -inf
        %1529 = vmax.xlane.f32.xlu0 %v1528
        %v1530 = vpop.xlane.xlu0 %1529
        %v1531 = vsub.f32 %v1505, %v1521
        %v1532 = vsub.f32 %v1508, %v1524
        %v1533 = vsub.f32 %v1513, %v1527
        %v1534 = vsub.f32 %v1516, %v1530
        %v1535 = vmul.f32 %v1531, 1.442695
        %v1536 = vpow.pop %v1535
        %v1537 = vmul.f32 %v1532, 1.442695
        %v1538 = vpow.pop %v1537
        %v1539 = vmul.f32 %v1533, 1.442695
        %v1540 = vpow.pop %v1539
        %v1541 = vmul.f32 %v1534, 1.442695
        %v1542 = vpow.pop %v1541
        %v1543 = vsel %vm929, %v1536, 0.0
        %1544 = vadd.xlane.f32.xlu0 %v1543
        %v1545 = vpop.xlane.xlu0 %1544
        %v1546 = vsel %vm929, %v1538, 0.0
        %1547 = vadd.xlane.f32.xlu0 %v1546
        %v1548 = vpop.xlane.xlu0 %1547
        %v1549 = vsel %vm929, %v1540, 0.0
        %1550 = vadd.xlane.f32.xlu0 %v1549
        %v1551 = vpop.xlane.xlu0 %1550
        %v1552 = vsel %vm929, %v1542, 0.0
        %1553 = vadd.xlane.f32.xlu0 %v1552
        %v1554 = vpop.xlane.xlu0 %1553
        %v1555 = vrcp.pop %v1545
        %v1556 = vrcp.pop %v1548
        %v1557 = vrcp.pop %v1551
        %v1558 = vrcp.pop %v1554
        %v1559 = vmul.f32 %v1536, %v1555
        %v1560 = vmul.f32 %v1538, %v1556
        %v1561 = vmul.f32 %v1540, %v1557
        %v1562 = vmul.f32 %v1542, %v1558
        %v1563 = vpack.c.bf16 %v1560, %v1559
        %v1564 = vpack.c.bf16 %v1562, %v1561
        %1565 = vrot.lane.b32.xlu0 %v927, 32
        %v1566 = vpop.permute.xlu0 %1565
        %1567 = vrot.lane.b32.xlu0 %v928, 32
        %v1568 = vpop.permute.xlu0 %1567
        %v1572 = vsel %vm929, %v1563, 0
        %v1575 = vsel %vm929, %v1564, 0
        %1577 = vmatprep.subr.bf16.mxu0 0
        %1578 = vmatpush1.bf16.msra.mxu0 0
        %1579 = vmatprep.subr.bf16.mxu0 0
        %1580 = vmatpush1.bf16.msra.mxu0 0
        %1581 = vmatprep.subr.bf16.mxu0 0
        %1582 = vmatpush1.bf16.msra.mxu0 0
        %1583 = vmatprep.subr.bf16.mxu0 0
        %1584 = vmatpush1.bf16.msra.mxu0 0
        %1585 = vmatprep.subr.bf16.mxu0 0
        %1586 = vmatpush1.bf16.msra.mxu0 0
        %1587 = vmatprep.subr.bf16.mxu0 0
        %1588 = vmatpush1.bf16.msra.mxu0 0
        %1589 = vmatprep.subr.bf16.mxu0 0
        %1590 = vmatpush1.bf16.msra.mxu0 %v1568
        %1591 = vmatprep.subr.bf16.mxu0 0
        %1592 = vmatpush1.bf16.msra.mxu0 %v1566
        %1593 = vmatprep.subr.bf16.mxu0 0
        %1594 = vmatpush2.bf16.msra.mxu0 0
        %1595 = vmatprep.subr.bf16.mxu0 0
        %1596 = vmatpush2.bf16.msra.mxu0 0
        %1597 = vmatprep.subr.bf16.mxu0 0
        %1598 = vmatpush2.bf16.msra.mxu0 0
        %1599 = vmatprep.subr.bf16.mxu0 0
        %1600 = vmatpush2.bf16.msra.mxu0 0
        %1601 = vmatprep.subr.bf16.mxu0 0
        %1602 = vmatpush2.bf16.msra.mxu0 0
        %1603 = vmatprep.subr.bf16.mxu0 0
        %1604 = vmatpush2.bf16.msra.mxu0 0
        %1605 = vmatprep.subr.bf16.mxu0 0
        %1606 = vmatpush2.bf16.msra.mxu0 0
        %1607 = vmatprep.subr.bf16.mxu0 0
        %1608 = vmatpush2.bf16.msra.mxu0 0
        %1609 = vmatprep.mubr.bf16.mxu0 0
        %1610 = vmatmul.mubr.bf16.gmra.mxu0 %v1572
        %v1611 = vpop.f32.mrf.mxu0
        %v1612 = vadd.f32 0.0, %v1611
        %v1613 = vpop.f32.mrf.mxu0
        %v1614 = vpop.f32.mrf.mxu0
        %v1615 = vadd.f32 0.0, %v1614
        %v1616 = vpop.f32.mrf.mxu0
        %1617 = vmatprep.mubr.bf16.mxu0 0
        %1618 = vmatmul.mubr.bf16.gmra.mxu0 %v1575
        %v1619 = vpop.f32.mrf.mxu0
        %v1620 = vadd.f32 0.0, %v1619
        %v1621 = vpop.f32.mrf.mxu0
        %v1622 = vpop.f32.mrf.mxu0
        %v1623 = vadd.f32 0.0, %v1622
        %v1624 = vpop.f32.mrf.mxu0
        %1625 = vdwg.mxu0
        %1630 = vrot.lane.b32.xlu0 %v1260, 32
        %v1631 = vpop.permute.xlu0 %1630
        %1632 = vrot.lane.b32.xlu0 %v1263, 32
        %v1633 = vpop.permute.xlu0 %1632
        %1634 = vrot.lane.b32.xlu0 %v1268, 32
        %v1635 = vpop.permute.xlu0 %1634
        %1636 = vrot.lane.b32.xlu0 %v1271, 32
        %v1637 = vpop.permute.xlu0 %1636
        %1646 = vrot.lane.b32.xlu0 %v1436, 64
        %v1647 = vpop.permute.xlu0 %1646
        %1648 = vrot.lane.b32.xlu0 %v1439, 64
        %v1649 = vpop.permute.xlu0 %1648
        %1650 = vrot.lane.b32.xlu0 %v1444, 64
        %v1651 = vpop.permute.xlu0 %1650
        %1652 = vrot.lane.b32.xlu0 %v1447, 64
        %v1653 = vpop.permute.xlu0 %1652
        %1662 = vrot.lane.b32.xlu0 %v1612, 96
        %v1663 = vpop.permute.xlu0 %1662
        %1664 = vrot.lane.b32.xlu0 %v1615, 96
        %v1665 = vpop.permute.xlu0 %1664
        %1666 = vrot.lane.b32.xlu0 %v1620, 96
        %v1667 = vpop.permute.xlu0 %1666
        %1668 = vrot.lane.b32.xlu0 %v1623, 96
        %v1669 = vpop.permute.xlu0 %1668
        %v1674 = vsel %vm929, %v1078, %v1631
        %v1675 = vsel %vm929, %v1081, %v1633
        %v1676 = vsel %vm929, %v1086, %v1635
        %v1677 = vsel %vm929, %v1089, %v1637
        %vm1678 = vcmask 523264
        %v1679 = vsel %vm1678, %v1674, %v1647
        %v1680 = vsel %vm1678, %v1675, %v1649
        %v1681 = vsel %vm1678, %v1676, %v1651
        %v1682 = vsel %vm1678, %v1677, %v1653
        %vm1683 = vcmask 785408
        %v1684 = vsel %vm1683, %v1679, %v1663
        %v1685 = vsel %vm1683, %v1680, %v1665
        %v1686 = vsel %vm1683, %v1681, %v1667
        %v1687 = vsel %vm1683, %v1682, %v1669
        %v1688 = vpack.c.bf16 %v1685, %v1684
        %v1689 = vpack.c.bf16 %v1687, %v1686
        %v1690 = vld [vmem:[#allocation13] sm:$0xf]
        %v1691 = vld [vmem:[#allocation13 + $0x4] sm:$0xf]
        %v1692 = vld [vmem:[#allocation13 + $0x8] sm:$0xf]
        %v1693 = vld [vmem:[#allocation13 + $0xc] sm:$0xf]
        %v1694 = vld [vmem:[#allocation13 + $0x10] sm:$0xf]
        %v1695 = vld [vmem:[#allocation13 + $0x14] sm:$0xf]
        %v1696 = vld [vmem:[#allocation13 + $0x18] sm:$0xf]
        %v1697 = vld [vmem:[#allocation13 + $0x1c] sm:$0xf]
        %v1698 = vld [vmem:[#allocation13 + $0x20] sm:$0xf]
        %v1699 = vld [vmem:[#allocation13 + $0x24] sm:$0xf]
        %v1700 = vld [vmem:[#allocation13 + $0x28] sm:$0xf]
        %v1701 = vld [vmem:[#allocation13 + $0x2c] sm:$0xf]
        %v1702 = vld [vmem:[#allocation13 + $0x30] sm:$0xf]
        %v1703 = vld [vmem:[#allocation13 + $0x34] sm:$0xf]
        %v1704 = vld [vmem:[#allocation13 + $0x38] sm:$0xf]
        %v1705 = vld [vmem:[#allocation13 + $0x3c] sm:$0xf]
        %v1706 = vld [vmem:[%s10] sm:$0x1]
        %v1708 = vlaneseq
        %v1709 = vshrl.u32 %v1708, 7
        %v1710 = vsub.s32 0, %v1709
        %v1711 = vrot.slane %v1706, %v1710
        %v1729 = vunpack.c.l.b16 %v1690
        %v1730 = vunpack.c.l.b16 %v1691
        %v1731 = vunpack.c.l.b16 %v1692
        %v1732 = vunpack.c.l.b16 %v1693
        %v1733 = vunpack.c.l.b16 %v1694
        %v1734 = vunpack.c.l.b16 %v1695
        %v1735 = vunpack.c.l.b16 %v1696
        %v1736 = vunpack.c.l.b16 %v1697
        %v1737 = vunpack.c.l.b16 %v1698
        %v1738 = vunpack.c.l.b16 %v1699
        %v1739 = vunpack.c.l.b16 %v1700
        %v1740 = vunpack.c.l.b16 %v1701
        %v1741 = vunpack.c.l.b16 %v1702
        %v1742 = vunpack.c.l.b16 %v1703
        %v1743 = vunpack.c.l.b16 %v1704
        %v1744 = vunpack.c.l.b16 %v1705
        %v1745 = vpack.c.b16 %v1730, %v1729
        %v1746 = vpack.c.b16 %v1732, %v1731
        %v1747 = vpack.c.b16 %v1734, %v1733
        %v1748 = vpack.c.b16 %v1736, %v1735
        %v1749 = vpack.c.b16 %v1738, %v1737
        %v1750 = vpack.c.b16 %v1740, %v1739
        %v1751 = vpack.c.b16 %v1742, %v1741
        %v1752 = vpack.c.b16 %v1744, %v1743
        %1761 = vmatprep.subr.bf16.mxu0 0
        %1762 = vmatpush1.bf16.msra.mxu0 %v1752
        %1763 = vmatprep.subr.bf16.mxu0 0
        %1764 = vmatpush1.bf16.msra.mxu0 %v1751
        %1765 = vmatprep.subr.bf16.mxu0 0
        %1766 = vmatpush1.bf16.msra.mxu0 %v1750
        %1767 = vmatprep.subr.bf16.mxu0 0
        %1768 = vmatpush1.bf16.msra.mxu0 %v1749
        %1769 = vmatprep.subr.bf16.mxu0 0
        %1770 = vmatpush1.bf16.msra.mxu0 %v1748
        %1771 = vmatprep.subr.bf16.mxu0 0
        %1772 = vmatpush1.bf16.msra.mxu0 %v1747
        %1773 = vmatprep.subr.bf16.mxu0 0
        %1774 = vmatpush1.bf16.msra.mxu0 %v1746
        %1775 = vmatprep.subr.bf16.mxu0 0
        %1776 = vmatpush1.bf16.msra.mxu0 %v1745
        %1777 = vmatprep.subr.bf16.mxu0 0
        %1778 = vmatpush2.bf16.msra.mxu0 0
        %1779 = vmatprep.subr.bf16.mxu0 0
        %1780 = vmatpush2.bf16.msra.mxu0 0
        %1781 = vmatprep.subr.bf16.mxu0 0
        %1782 = vmatpush2.bf16.msra.mxu0 0
        %1783 = vmatprep.subr.bf16.mxu0 0
        %1784 = vmatpush2.bf16.msra.mxu0 0
        %1785 = vmatprep.subr.bf16.mxu0 0
        %1786 = vmatpush2.bf16.msra.mxu0 0
        %1787 = vmatprep.subr.bf16.mxu0 0
        %1788 = vmatpush2.bf16.msra.mxu0 0
        %1789 = vmatprep.subr.bf16.mxu0 0
        %1790 = vmatpush2.bf16.msra.mxu0 0
        %1791 = vmatprep.subr.bf16.mxu0 0
        %1792 = vmatpush2.bf16.msra.mxu0 0
        %1793 = vmatprep.mubr.bf16.mxu0 0
        %1794 = vmatmul.mubr.bf16.gmra.mxu0 %v1688
        %v1795 = vpop.f32.mrf.mxu0
        %v1796 = vadd.f32 %v1711, %v1795
        %v1797 = vpop.f32.mrf.mxu0
        %v1798 = vpop.f32.mrf.mxu0
        %v1799 = vadd.f32 %v1711, %v1798
        %v1800 = vpop.f32.mrf.mxu0
        %1801 = vmatprep.mubr.bf16.mxu0 0
        %1802 = vmatmul.mubr.bf16.gmra.mxu0 %v1689
        %v1803 = vpop.f32.mrf.mxu0
        %v1804 = vadd.f32 %v1711, %v1803
        %v1805 = vpop.f32.mrf.mxu0
        %v1806 = vpop.f32.mrf.mxu0
        %v1807 = vadd.f32 %v1711, %v1806
        %v1808 = vpop.f32.mrf.mxu0
        %1809 = vdwg.mxu0
        %1810 = vst [vmem:[%s539] sm:$0xff] %v1796
        %1811 = vst [vmem:[%s539 + $0x8] sm:$0xff] %v1799
        %1812 = vst [vmem:[%s539 + $0x10] sm:$0xff] %v1804
        %1813 = vst [vmem:[%s539 + $0x18] sm:$0xff] %v1807
        %s1814 = sand.u32 %s287, 1
        %s1815 = scalar_lea.sflag [#allocation4], %s1814
        %s1816 = sand.u32 %s287, 1
        %s1817 = smul.addr %s1816, 32
        %s1818 = scalar_lea.vmem [#allocation14], %s1817
        // Predicated region
        $region93: #{_lambda_.1} parent=63 // pred_check
          %p1819 = pneg %p297
        $region94: #{_lambda_.1} parent=63 // pred_check_branch
          %1821 = sbr.rel (%p1819) target = $region96
        $region95: #{_lambda_.1} parent=63 // pred_region
          %s1823 = ssub.s32 512, 512
          %1824 = vsyncadd %s1815, %s1823
          %s1825 = smul.addr %s33, 4
          %s1826 = smul.addr %s1825, 128
          %s1827 = scalar_lea.hbm %s11, %s1826
          %s1828 = sshll.u32 %s1818, 4
          %s1829 = int_to_ptr.vmem [resolvable:$true] %s1828
          %1834 = dma.vmem_to_hbm [thread:$0]  %s1829, 512, %s1827, %s1815, 128, 128, 8
        $region96: #{_lambda_.1} parent=63 // pred_fallthru
          _
      $region64: #{_lambda_.1} parent=5 // pred_fallthru
        _
      %p1835 = scmp.le.s32.totalorder 2, %s28
      // Predicated region
      $region97: #{_lambda_.1} parent=5 // pred_check
        %p1836 = pneg %p1835
      $region98: #{_lambda_.1} parent=5 // pred_check_branch
        %1838 = sbr.rel (%p1836) target = $region100
      $region99: #{_lambda_.1} parent=5 // pred_region
        %s1839 = ssub.s32 %s28, 2
        // Predicated region
        $region101: #{_lambda_.1} parent=99 // pred_check
          %p1840 = pneg %p303
        $region102: #{_lambda_.1} parent=99 // pred_check_branch
          %1842 = sbr.rel (%p1840) target = $region104
        $region103: #{_lambda_.1} parent=99 // pred_region
          %s1843 = sand.u32 %s288, 1
          %s1844 = scalar_lea.sflag [#allocation4], %s1843
          %s1845 = sand.u32 %s288, 1
          %s1846 = smul.addr %s1845, 32
          %s1847 = scalar_lea.vmem [#allocation14], %s1846
          %1848 = dma.done %s1844, 512
        $region104: #{_lambda_.1} parent=99 // pred_fallthru
          _
      $region100: #{_lambda_.1} parent=5 // pred_fallthru
        _
    $region6: #{_lambda_.1} parent=1 // loop_footer
      %s32 = sadd.s32 1, %s28
    $region7: #{_lambda_.1} parent=1 // loop_footer_branch
      %27 = sbr.rel target = $region3
    $region8: #{_lambda_.1} parent=1 // loop_exit
      _
    %1849 = vsyncpa [#allocation3], 1
    %s1850 = scalar_lea.sflag [#allocation3], 1
    %1851 = vsyncpa %s1850, 1
    %1852 = vsyncpa [#allocation6], 1
    %s1853 = scalar_lea.sflag [#allocation6], 1
    %1854 = vsyncpa %s1853, 1
    %1855 = vsyncpa [#allocation9], 1
    %1856 = vsyncpa [#allocation12], 1
    %1857 = vsyncpa [#allocation4], 1
    %s1858 = scalar_lea.sflag [#allocation4], 1
    %1859 = vsyncpa %s1858, 1

</llo_original>
